<compile_context>
chip_gen: v7x
topology: tpu7x:2x2x1
jax: 0.10.0
libtpu: 0.0.40
codegen_flags: <defaults>
</compile_context>

<pallas_src>
import functools

import numpy as np
import jax
import jax.numpy as jnp
from jax.experimental import pallas as pl
from jax.experimental.pallas import tpu as pltpu


def gamma_kernel(x_ref, w1_ref, b1_ref, w3_ref, b3_ref, ml_ref, mr_ref, mlr_ref,
                 out_ref, *, feat, inv_n1, inv_n2, inv_n3):
    f32 = jnp.float32
    kw = dict(preferred_element_type=f32)

    # ---- conv1 (1x1 conv, K = Cin = 4): too small for the MXU -> VPU FMAs ----
    x = x_ref[...]                                   # (Cin, BHW) lane-dense
    w1 = w1_ref[...]                                 # (4*feat, Cin)
    cin = x.shape[0]
    y = w1[:, 0:1] * x[0:1, :]
    for c in range(1, cin):                          # unrolled: Cin is tiny & static
        y = y + w1[:, c:c + 1] * x[c:c + 1, :]
    y = jnp.maximum(y + b1_ref[...], 0.0)            # (4*feat, BHW)

    # ---- postprocess(y) fused into conv3: 4 partial matmuls, no concat ----
    # Mixing operators are bf16 {0,1}; load each right where its dot consumes
    # it (short live range) and apply the 1/n_cat scale in f32 after the dot.
    w3 = w3_ref[...]                                 # (Cout, 4*feat)
    m1 = jnp.dot(y[feat:2 * feat], ml_ref[...].astype(f32), **kw) * inv_n1
    m2 = jnp.dot(y[2 * feat:3 * feat], mr_ref[...].astype(f32), **kw) * inv_n2
    m3 = jnp.dot(y[3 * feat:4 * feat], mlr_ref[...].astype(f32), **kw) * inv_n3
    z = (jnp.dot(w3[:, :feat], y[:feat], **kw)
         + jnp.dot(w3[:, feat:2 * feat], m1, **kw)
         + jnp.dot(w3[:, 2 * feat:3 * feat], m2, **kw)
         + jnp.dot(w3[:, 3 * feat:4 * feat], m3, **kw)
         + b3_ref[...])                              # (Cout, BHW)
    z = jnp.maximum(z, 0.0)                          # final_layer == False path

    # ---- final postprocess(z): write chunks straight to sublane slices ----
    dt = out_ref.dtype
    out_ref[0:feat, :] = z[:feat].astype(dt)
    out_ref[feat:2 * feat, :] = (
        jnp.dot(z[feat:2 * feat], ml_ref[...].astype(f32), **kw) * inv_n1).astype(dt)
    out_ref[2 * feat:3 * feat, :] = (
        jnp.dot(z[2 * feat:3 * feat], mr_ref[...].astype(f32), **kw) * inv_n2).astype(dt)
    out_ref[3 * feat:4 * feat, :] = (
        jnp.dot(z[3 * feat:4 * feat], mlr_ref[...].astype(f32), **kw) * inv_n3).astype(dt)


@functools.lru_cache(maxsize=None)
def _mixing_operators(B, H, W):
    """Lane-mixing operators for the flattened (b, h, w) pixel axis (built once).

    With ex = ones - eye (the module's static exclude-self mixer), right-multiplying
    the lane-dense (channels, B*H*W) activations by
        ML  = I_B (x) ex^T (x) I_W   implements  ex @ g
        MR  = I_B (x) I_H  (x) ex    implements  g @ ex
        MLR = I_B (x) ex^T (x) ex    implements  ex @ g @ ex
    Entries are {0,1} -> lossless in bf16 (halves the operator DMA); the 1/n_cat
    scales are applied in f32 inside the kernel.
    """
    ex = (np.ones((H, W)) - np.eye(H, W)).astype(np.float64)
    eb, eh, ew = np.eye(B), np.eye(H), np.eye(W)
    ml = np.kron(eb, np.kron(ex.T, ew))
    mr = np.kron(eb, np.kron(eh, ex))
    mlr = np.kron(eb, np.kron(ex.T, ex))
    cast = lambda a: jnp.asarray(a, dtype=jnp.bfloat16)
    return cast(ml), cast(mr), cast(mlr)


def gamma_forward(x, w1, b1, w3, b3, *, feat, num_users):
    B, Cin, H, W = x.shape
    C1 = w1.shape[0]
    Cout = w3.shape[0]
    if Cout != 4 * feat:
        raise ValueError("final_layer=False path requires output_dim == 4*gamma_feature_dim")
    if num_users <= 1:
        raise ValueError("num_users must be > 1 (n_cat scales would be zero)")
    BHW = B * H * W

    ml, mr, mlr = _mixing_operators(B, H, W)   # cached {0,1} bf16 operators

    inv_n1 = 1.0 / float(num_users - 1)
    inv_n2 = 1.0 / float(num_users - 1)
    inv_n3 = 1.0 / float((num_users - 1) ** 2)

    # Lane-dense layout: channels on sublanes, (b, h, w) flattened onto lanes.
    x_k = jnp.transpose(x, (1, 0, 2, 3)).reshape(Cin, BHW)

    kernel = functools.partial(gamma_kernel, feat=feat,
                               inv_n1=inv_n1, inv_n2=inv_n2, inv_n3=inv_n3)
    out_k = pl.pallas_call(
        kernel,
        out_shape=jax.ShapeDtypeStruct((Cout, BHW), x.dtype),
        grid_spec=pltpu.PrefetchScalarGridSpec(
            num_scalar_prefetch=0,
            grid=(1,),  # whole problem in one grid step (working set << VMEM)
            in_specs=[
                pl.BlockSpec((Cin, BHW), lambda i: (0, 0)),   # x (lane-flattened)
                pl.BlockSpec((C1, Cin), lambda i: (0, 0)),    # conv1 weight
                pl.BlockSpec((C1, 1), lambda i: (0, 0)),      # conv1 bias
                pl.BlockSpec((Cout, C1), lambda i: (0, 0)),   # conv3 weight
                pl.BlockSpec((Cout, 1), lambda i: (0, 0)),    # conv3 bias
                pl.BlockSpec((BHW, BHW), lambda i: (0, 0)),   # ML  (bf16 {0,1})
                pl.BlockSpec((BHW, BHW), lambda i: (0, 0)),   # MR  (bf16 {0,1})
                pl.BlockSpec((BHW, BHW), lambda i: (0, 0)),   # MLR (bf16 {0,1})
            ],
            out_specs=pl.BlockSpec((Cout, BHW), lambda i: (0, 0)),
        ),
        compiler_params=pltpu.CompilerParams(dimension_semantics=("arbitrary",)),
    )(x_k, w1, b1.reshape(-1, 1), w3, b3.reshape(-1, 1), ml, mr, mlr)

    # Back to the module's NCHW convention: (Cout, B, H, W) -> (B, Cout, H, W).
    return jnp.transpose(out_k.reshape(Cout, B, H, W), (1, 0, 2, 3))


def gamma_ref(x, w1, b1, w3, b3, ex, *, feat, num_users):
    """Pure-JAX reference mirroring the PyTorch forward (final_layer=False)."""
    n1 = num_users - 1
    n2 = num_users - 1
    n3 = (num_users - 1) ** 2
    hp = jax.lax.Precision.HIGHEST

    def conv1x1(t, w, b):
        return jnp.einsum('oc,bchw->bohw', w, t, precision=hp) + b[None, :, None, None]

    def post(t):
        g0 = t[:, :feat]
        g1 = t[:, feat:2 * feat]
        g2 = t[:, 2 * feat:3 * feat]
        g3 = t[:, 3 * feat:4 * feat]
        c1 = jnp.einsum('ph,bchw->bcpw', ex, g1, precision=hp) / n1
        c2 = jnp.einsum('bchw,wq->bchq', g2, ex, precision=hp) / n2
        c3 = jnp.einsum('ph,bchw,wq->bcpq', ex, g3, ex, precision=hp) / n3
        return jnp.concatenate([g0, c1, c2, c3], axis=1)

    r = jax.nn.relu(conv1x1(x, w1, b1))
    r = post(r)
    r = conv1x1(r, w3, b3)
    r = post(jax.nn.relu(r))
    return r


if __name__ == "__main__":
    # params consistent with the module's __init__
    params = dict(gamma_feature_dim=8, preselection_ap=8, num_users=5)
    feat = params['gamma_feature_dim']
    P = params['preselection_ap']
    num_users = params['num_users']
    input_dim = 4
    output_dim = 4 * feat     # second postprocess requires output_dim == 4*feat
    B = 2

    key = jax.random.PRNGKey(0)
    k = jax.random.split(key, 5)
    x = jax.random.normal(k[0], (B, input_dim, P, P), jnp.float32)
    w1 = jax.random.normal(k[1], (4 * feat, input_dim), jnp.float32) * 0.2
    b1 = jax.random.normal(k[2], (4 * feat,), jnp.float32) * 0.1
    w3 = jax.random.normal(k[3], (output_dim, 4 * feat), jnp.float32) * 0.2
    b3 = jax.random.normal(k[4], (output_dim,), jnp.float32) * 0.1
    ex = jnp.ones((P, P), jnp.float32) - jnp.eye(P, dtype=jnp.float32)

    out = gamma_forward(x, w1, b1, w3, b3, feat=feat, num_users=num_users)
    out = jax.block_until_ready(out)

    ref = gamma_ref(x, w1, b1, w3, b3, ex, feat=feat, num_users=num_users)
    assert out.shape == (B, output_dim, P, P), out.shape
    max_err = float(jnp.max(jnp.abs(out - ref)))
    assert max_err < 2e-2, f"max abs err too large: {max_err}"
    print("KERNEL_OK")
</pallas_src>

<mosaic_0001>
module attributes {stable_mosaic.version = 11 : i64} {
  func.func @gamma_kernel(%arg0: i32, %arg1: memref<4x128xf32, #tpu.memory_space<vmem>>, %arg2: memref<32x4xf32, #tpu.memory_space<vmem>>, %arg3: memref<32x1xf32, #tpu.memory_space<vmem>>, %arg4: memref<32x32xf32, #tpu.memory_space<vmem>>, %arg5: memref<32x1xf32, #tpu.memory_space<vmem>>, %arg6: memref<128x128xbf16, #tpu.memory_space<vmem>>, %arg7: memref<128x128xbf16, #tpu.memory_space<vmem>>, %arg8: memref<128x128xbf16, #tpu.memory_space<vmem>>, %arg9: memref<32x128xf32, #tpu.memory_space<vmem>>) attributes {dimension_semantics = [#tpu.dimension_semantics<arbitrary>], iteration_bounds = array<i64: 1>, scalar_prefetch = 0 : i64, scratch_operands = 0 : i64, tpu.core_type = #tpu.core_type<tc>, window_params = [{pipeline_mode = #tpu.pipeline_mode<synchronous>, transform_indices = @transform_0, window_bounds = array<i64: 4, 128>}, {pipeline_mode = #tpu.pipeline_mode<synchronous>, transform_indices = @transform_1, window_bounds = array<i64: 32, 4>}, {pipeline_mode = #tpu.pipeline_mode<synchronous>, transform_indices = @transform_2, window_bounds = array<i64: 32, 1>}, {pipeline_mode = #tpu.pipeline_mode<synchronous>, transform_indices = @transform_3, window_bounds = array<i64: 32, 32>}, {pipeline_mode = #tpu.pipeline_mode<synchronous>, transform_indices = @transform_4, window_bounds = array<i64: 32, 1>}, {pipeline_mode = #tpu.pipeline_mode<synchronous>, transform_indices = @transform_5, window_bounds = array<i64: 128, 128>}, {pipeline_mode = #tpu.pipeline_mode<synchronous>, transform_indices = @transform_6, window_bounds = array<i64: 128, 128>}, {pipeline_mode = #tpu.pipeline_mode<synchronous>, transform_indices = @transform_7, window_bounds = array<i64: 128, 128>}, {pipeline_mode = #tpu.pipeline_mode<synchronous>, transform_indices = @transform_8, window_bounds = array<i64: 32, 128>}]} {
    %c0 = arith.constant 0 : index
    %c0_0 = arith.constant 0 : index
    %0 = vector.load %arg1[%c0, %c0_0] : memref<4x128xf32, #tpu.memory_space<vmem>>, vector<4x128xf32>
    %c0_1 = arith.constant 0 : index
    %c0_2 = arith.constant 0 : index
    %1 = vector.load %arg2[%c0_1, %c0_2] : memref<32x4xf32, #tpu.memory_space<vmem>>, vector<32x4xf32>
    %2 = vector.extract_strided_slice %1 {offsets = [0, 0], sizes = [32, 1], strides = [1, 1]} : vector<32x4xf32> to vector<32x1xf32>
    %3 = vector.extract_strided_slice %0 {offsets = [0, 0], sizes = [1, 128], strides = [1, 1]} : vector<4x128xf32> to vector<1x128xf32>
    %4 = vector.broadcast %2 : vector<32x1xf32> to vector<32x128xf32>
    %5 = vector.broadcast %3 : vector<1x128xf32> to vector<32x128xf32>
    %6 = arith.mulf %4, %5 : vector<32x128xf32>
    %7 = vector.extract_strided_slice %1 {offsets = [0, 1], sizes = [32, 1], strides = [1, 1]} : vector<32x4xf32> to vector<32x1xf32>
    %8 = vector.extract_strided_slice %0 {offsets = [1, 0], sizes = [1, 128], strides = [1, 1]} : vector<4x128xf32> to vector<1x128xf32>
    %9 = vector.broadcast %7 : vector<32x1xf32> to vector<32x128xf32>
    %10 = vector.broadcast %8 : vector<1x128xf32> to vector<32x128xf32>
    %11 = arith.mulf %9, %10 : vector<32x128xf32>
    %12 = arith.addf %6, %11 : vector<32x128xf32>
    %13 = vector.extract_strided_slice %1 {offsets = [0, 2], sizes = [32, 1], strides = [1, 1]} : vector<32x4xf32> to vector<32x1xf32>
    %14 = vector.extract_strided_slice %0 {offsets = [2, 0], sizes = [1, 128], strides = [1, 1]} : vector<4x128xf32> to vector<1x128xf32>
    %15 = vector.broadcast %13 : vector<32x1xf32> to vector<32x128xf32>
    %16 = vector.broadcast %14 : vector<1x128xf32> to vector<32x128xf32>
    %17 = arith.mulf %15, %16 : vector<32x128xf32>
    %18 = arith.addf %12, %17 : vector<32x128xf32>
    %19 = vector.extract_strided_slice %1 {offsets = [0, 3], sizes = [32, 1], strides = [1, 1]} : vector<32x4xf32> to vector<32x1xf32>
    %20 = vector.extract_strided_slice %0 {offsets = [3, 0], sizes = [1, 128], strides = [1, 1]} : vector<4x128xf32> to vector<1x128xf32>
    %21 = vector.broadcast %19 : vector<32x1xf32> to vector<32x128xf32>
    %22 = vector.broadcast %20 : vector<1x128xf32> to vector<32x128xf32>
    %23 = arith.mulf %21, %22 : vector<32x128xf32>
    %24 = arith.addf %18, %23 : vector<32x128xf32>
    %c0_3 = arith.constant 0 : index
    %c0_4 = arith.constant 0 : index
    %25 = vector.load %arg3[%c0_3, %c0_4] : memref<32x1xf32, #tpu.memory_space<vmem>>, vector<32x1xf32>
    %26 = vector.broadcast %25 : vector<32x1xf32> to vector<32x128xf32>
    %27 = arith.addf %24, %26 : vector<32x128xf32>
    %cst = arith.constant 0.000000e+00 : f32
    %28 = vector.broadcast %cst : f32 to vector<32x128xf32>
    %29 = arith.maximumf %27, %28 : vector<32x128xf32>
    %c0_5 = arith.constant 0 : index
    %c0_6 = arith.constant 0 : index
    %30 = vector.load %arg4[%c0_5, %c0_6] : memref<32x32xf32, #tpu.memory_space<vmem>>, vector<32x32xf32>
    %31 = vector.extract_strided_slice %29 {offsets = [8, 0], sizes = [8, 128], strides = [1, 1]} : vector<32x128xf32> to vector<8x128xf32>
    %c0_7 = arith.constant 0 : index
    %c0_8 = arith.constant 0 : index
    %32 = vector.load %arg6[%c0_7, %c0_8] : memref<128x128xbf16, #tpu.memory_space<vmem>>, vector<128x128xbf16>
    %33 = arith.extf %32 : vector<128x128xbf16> to vector<128x128xf32>
    %cst_9 = arith.constant dense<0.000000e+00> : vector<8x128xf32>
    %34 = tpu.matmul %31, %33, %cst_9 {dimension_numbers = #tpu.dot_dimension_numbers<[1], [0], [0], [1], [0, 0, 1, 1], [], []>} : vector<8x128xf32>, vector<128x128xf32>, vector<8x128xf32> -> vector<8x128xf32>
    %cst_10 = arith.constant 2.500000e-01 : f32
    %35 = vector.broadcast %cst_10 : f32 to vector<8x128xf32>
    %36 = arith.mulf %34, %35 : vector<8x128xf32>
    %37 = vector.extract_strided_slice %29 {offsets = [16, 0], sizes = [8, 128], strides = [1, 1]} : vector<32x128xf32> to vector<8x128xf32>
    %c0_11 = arith.constant 0 : index
    %c0_12 = arith.constant 0 : index
    %38 = vector.load %arg7[%c0_11, %c0_12] : memref<128x128xbf16, #tpu.memory_space<vmem>>, vector<128x128xbf16>
    %39 = arith.extf %38 : vector<128x128xbf16> to vector<128x128xf32>
    %cst_13 = arith.constant dense<0.000000e+00> : vector<8x128xf32>
    %40 = tpu.matmul %37, %39, %cst_13 {dimension_numbers = #tpu.dot_dimension_numbers<[1], [0], [0], [1], [0, 0, 1, 1], [], []>} : vector<8x128xf32>, vector<128x128xf32>, vector<8x128xf32> -> vector<8x128xf32>
    %cst_14 = arith.constant 2.500000e-01 : f32
    %41 = vector.broadcast %cst_14 : f32 to vector<8x128xf32>
    %42 = arith.mulf %40, %41 : vector<8x128xf32>
    %43 = vector.extract_strided_slice %29 {offsets = [24, 0], sizes = [8, 128], strides = [1, 1]} : vector<32x128xf32> to vector<8x128xf32>
    %c0_15 = arith.constant 0 : index
    %c0_16 = arith.constant 0 : index
    %44 = vector.load %arg8[%c0_15, %c0_16] : memref<128x128xbf16, #tpu.memory_space<vmem>>, vector<128x128xbf16>
    %45 = arith.extf %44 : vector<128x128xbf16> to vector<128x128xf32>
    %cst_17 = arith.constant dense<0.000000e+00> : vector<8x128xf32>
    %46 = tpu.matmul %43, %45, %cst_17 {dimension_numbers = #tpu.dot_dimension_numbers<[1], [0], [0], [1], [0, 0, 1, 1], [], []>} : vector<8x128xf32>, vector<128x128xf32>, vector<8x128xf32> -> vector<8x128xf32>
    %cst_18 = arith.constant 6.250000e-02 : f32
    %47 = vector.broadcast %cst_18 : f32 to vector<8x128xf32>
    %48 = arith.mulf %46, %47 : vector<8x128xf32>
    %49 = vector.extract_strided_slice %30 {offsets = [0, 0], sizes = [32, 8], strides = [1, 1]} : vector<32x32xf32> to vector<32x8xf32>
    %50 = vector.extract_strided_slice %29 {offsets = [0, 0], sizes = [8, 128], strides = [1, 1]} : vector<32x128xf32> to vector<8x128xf32>
    %cst_19 = arith.constant dense<0.000000e+00> : vector<32x128xf32>
    %51 = tpu.matmul %49, %50, %cst_19 {dimension_numbers = #tpu.dot_dimension_numbers<[1], [0], [0], [1], [0, 0, 1, 1], [], []>} : vector<32x8xf32>, vector<8x128xf32>, vector<32x128xf32> -> vector<32x128xf32>
    %52 = vector.extract_strided_slice %30 {offsets = [0, 8], sizes = [32, 8], strides = [1, 1]} : vector<32x32xf32> to vector<32x8xf32>
    %cst_20 = arith.constant dense<0.000000e+00> : vector<32x128xf32>
    %53 = tpu.matmul %52, %36, %cst_20 {dimension_numbers = #tpu.dot_dimension_numbers<[1], [0], [0], [1], [0, 0, 1, 1], [], []>} : vector<32x8xf32>, vector<8x128xf32>, vector<32x128xf32> -> vector<32x128xf32>
    %54 = arith.addf %51, %53 : vector<32x128xf32>
    %55 = vector.extract_strided_slice %30 {offsets = [0, 16], sizes = [32, 8], strides = [1, 1]} : vector<32x32xf32> to vector<32x8xf32>
    %cst_21 = arith.constant dense<0.000000e+00> : vector<32x128xf32>
    %56 = tpu.matmul %55, %42, %cst_21 {dimension_numbers = #tpu.dot_dimension_numbers<[1], [0], [0], [1], [0, 0, 1, 1], [], []>} : vector<32x8xf32>, vector<8x128xf32>, vector<32x128xf32> -> vector<32x128xf32>
    %57 = arith.addf %54, %56 : vector<32x128xf32>
    %58 = vector.extract_strided_slice %30 {offsets = [0, 24], sizes = [32, 8], strides = [1, 1]} : vector<32x32xf32> to vector<32x8xf32>
    %cst_22 = arith.constant dense<0.000000e+00> : vector<32x128xf32>
    %59 = tpu.matmul %58, %48, %cst_22 {dimension_numbers = #tpu.dot_dimension_numbers<[1], [0], [0], [1], [0, 0, 1, 1], [], []>} : vector<32x8xf32>, vector<8x128xf32>, vector<32x128xf32> -> vector<32x128xf32>
    %60 = arith.addf %57, %59 : vector<32x128xf32>
    %c0_23 = arith.constant 0 : index
    %c0_24 = arith.constant 0 : index
    %61 = vector.load %arg5[%c0_23, %c0_24] : memref<32x1xf32, #tpu.memory_space<vmem>>, vector<32x1xf32>
    %62 = vector.broadcast %61 : vector<32x1xf32> to vector<32x128xf32>
    %63 = arith.addf %60, %62 : vector<32x128xf32>
    %cst_25 = arith.constant 0.000000e+00 : f32
    %64 = vector.broadcast %cst_25 : f32 to vector<32x128xf32>
    %65 = arith.maximumf %63, %64 : vector<32x128xf32>
    %66 = vector.extract_strided_slice %65 {offsets = [0, 0], sizes = [8, 128], strides = [1, 1]} : vector<32x128xf32> to vector<8x128xf32>
    %c0_26 = arith.constant 0 : index
    %c0_27 = arith.constant 0 : index
    %67 = vector.load %arg9[%c0_26, %c0_27] : memref<32x128xf32, #tpu.memory_space<vmem>>, vector<8x128xf32>
    tpu.vector_store %arg9[%c0_26, %c0_27], %66 {strides = array<i32>} : memref<32x128xf32, #tpu.memory_space<vmem>>, vector<8x128xf32>,
    %68 = vector.extract_strided_slice %65 {offsets = [8, 0], sizes = [8, 128], strides = [1, 1]} : vector<32x128xf32> to vector<8x128xf32>
    %c0_28 = arith.constant 0 : index
    %c0_29 = arith.constant 0 : index
    %69 = vector.load %arg6[%c0_28, %c0_29] : memref<128x128xbf16, #tpu.memory_space<vmem>>, vector<128x128xbf16>
    %70 = arith.extf %69 : vector<128x128xbf16> to vector<128x128xf32>
    %cst_30 = arith.constant dense<0.000000e+00> : vector<8x128xf32>
    %71 = tpu.matmul %68, %70, %cst_30 {dimension_numbers = #tpu.dot_dimension_numbers<[1], [0], [0], [1], [0, 0, 1, 1], [], []>} : vector<8x128xf32>, vector<128x128xf32>, vector<8x128xf32> -> vector<8x128xf32>
    %cst_31 = arith.constant 2.500000e-01 : f32
    %72 = vector.broadcast %cst_31 : f32 to vector<8x128xf32>
    %73 = arith.mulf %71, %72 : vector<8x128xf32>
    %c8 = arith.constant 8 : index
    %c0_32 = arith.constant 0 : index
    %74 = vector.load %arg9[%c8, %c0_32] : memref<32x128xf32, #tpu.memory_space<vmem>>, vector<8x128xf32>
    tpu.vector_store %arg9[%c8, %c0_32], %73 {strides = array<i32>} : memref<32x128xf32, #tpu.memory_space<vmem>>, vector<8x128xf32>,
    %75 = vector.extract_strided_slice %65 {offsets = [16, 0], sizes = [8, 128], strides = [1, 1]} : vector<32x128xf32> to vector<8x128xf32>
    %c0_33 = arith.constant 0 : index
    %c0_34 = arith.constant 0 : index
    %76 = vector.load %arg7[%c0_33, %c0_34] : memref<128x128xbf16, #tpu.memory_space<vmem>>, vector<128x128xbf16>
    %77 = arith.extf %76 : vector<128x128xbf16> to vector<128x128xf32>
    %cst_35 = arith.constant dense<0.000000e+00> : vector<8x128xf32>
    %78 = tpu.matmul %75, %77, %cst_35 {dimension_numbers = #tpu.dot_dimension_numbers<[1], [0], [0], [1], [0, 0, 1, 1], [], []>} : vector<8x128xf32>, vector<128x128xf32>, vector<8x128xf32> -> vector<8x128xf32>
    %cst_36 = arith.constant 2.500000e-01 : f32
    %79 = vector.broadcast %cst_36 : f32 to vector<8x128xf32>
    %80 = arith.mulf %78, %79 : vector<8x128xf32>
    %c16 = arith.constant 16 : index
    %c0_37 = arith.constant 0 : index
    %81 = vector.load %arg9[%c16, %c0_37] : memref<32x128xf32, #tpu.memory_space<vmem>>, vector<8x128xf32>
    tpu.vector_store %arg9[%c16, %c0_37], %80 {strides = array<i32>} : memref<32x128xf32, #tpu.memory_space<vmem>>, vector<8x128xf32>,
    %82 = vector.extract_strided_slice %65 {offsets = [24, 0], sizes = [8, 128], strides = [1, 1]} : vector<32x128xf32> to vector<8x128xf32>
    %c0_38 = arith.constant 0 : index
    %c0_39 = arith.constant 0 : index
    %83 = vector.load %arg8[%c0_38, %c0_39] : memref<128x128xbf16, #tpu.memory_space<vmem>>, vector<128x128xbf16>
    %84 = arith.extf %83 : vector<128x128xbf16> to vector<128x128xf32>
    %cst_40 = arith.constant dense<0.000000e+00> : vector<8x128xf32>
    %85 = tpu.matmul %82, %84, %cst_40 {dimension_numbers = #tpu.dot_dimension_numbers<[1], [0], [0], [1], [0, 0, 1, 1], [], []>} : vector<8x128xf32>, vector<128x128xf32>, vector<8x128xf32> -> vector<8x128xf32>
    %cst_41 = arith.constant 6.250000e-02 : f32
    %86 = vector.broadcast %cst_41 : f32 to vector<8x128xf32>
    %87 = arith.mulf %85, %86 : vector<8x128xf32>
    %c24 = arith.constant 24 : index
    %c0_42 = arith.constant 0 : index
    %88 = vector.load %arg9[%c24, %c0_42] : memref<32x128xf32, #tpu.memory_space<vmem>>, vector<8x128xf32>
    tpu.vector_store %arg9[%c24, %c0_42], %87 {strides = array<i32>} : memref<32x128xf32, #tpu.memory_space<vmem>>, vector<8x128xf32>,
    return
  }
  func.func @transform_0(%arg0: i32) -> (i32, i32) {
    %c0_i32 = arith.constant 0 : i32
    %c0_i32_0 = arith.constant 0 : i32
    %c0_i32_1 = arith.constant 0 : i32
    return %c0_i32, %c0_i32_0 : i32, i32
  }
  func.func @transform_1(%arg0: i32) -> (i32, i32) {
    %c0_i32 = arith.constant 0 : i32
    %c0_i32_0 = arith.constant 0 : i32
    %c0_i32_1 = arith.constant 0 : i32
    return %c0_i32, %c0_i32_0 : i32, i32
  }
  func.func @transform_2(%arg0: i32) -> (i32, i32) {
    %c0_i32 = arith.constant 0 : i32
    %c0_i32_0 = arith.constant 0 : i32
    %c0_i32_1 = arith.constant 0 : i32
    return %c0_i32, %c0_i32_0 : i32, i32
  }
  func.func @transform_3(%arg0: i32) -> (i32, i32) {
    %c0_i32 = arith.constant 0 : i32
    %c0_i32_0 = arith.constant 0 : i32
    %c0_i32_1 = arith.constant 0 : i32
    return %c0_i32, %c0_i32_0 : i32, i32
  }
  func.func @transform_4(%arg0: i32) -> (i32, i32) {
    %c0_i32 = arith.constant 0 : i32
    %c0_i32_0 = arith.constant 0 : i32
    %c0_i32_1 = arith.constant 0 : i32
    return %c0_i32, %c0_i32_0 : i32, i32
  }
  func.func @transform_5(%arg0: i32) -> (i32, i32) {
    %c0_i32 = arith.constant 0 : i32
    %c0_i32_0 = arith.constant 0 : i32
    %c0_i32_1 = arith.constant 0 : i32
    return %c0_i32, %c0_i32_0 : i32, i32
  }
  func.func @transform_6(%arg0: i32) -> (i32, i32) {
    %c0_i32 = arith.constant 0 : i32
    %c0_i32_0 = arith.constant 0 : i32
    %c0_i32_1 = arith.constant 0 : i32
    return %c0_i32, %c0_i32_0 : i32, i32
  }
  func.func @transform_7(%arg0: i32) -> (i32, i32) {
    %c0_i32 = arith.constant 0 : i32
    %c0_i32_0 = arith.constant 0 : i32
    %c0_i32_1 = arith.constant 0 : i32
    return %c0_i32, %c0_i32_0 : i32, i32
  }
  func.func @transform_8(%arg0: i32) -> (i32, i32) {
    %c0_i32 = arith.constant 0 : i32
    %c0_i32_0 = arith.constant 0 : i32
    %c0_i32_1 = arith.constant 0 : i32
    return %c0_i32, %c0_i32_0 : i32, i32
  }
}

</mosaic_0001>

<llo_original>
// kernel: tpu_custom_call.1
$region0: #{tpu_custom_call.1}
  #allocation0 [shape = 'u32[]', space=smem, size = 0x4, offset = 0x4, fixed_abs, tag = 'smem constant byte address 0x4 - core index']
  #allocation1 [shape = 'u32[144,128]{1,0:T(1,128)}', space=vmem, size = 0x12000, scoped, tag = 'internal scratch']
  %s0 = inlined_call_operand.hbm [shape: f32[4,128], index: 0, kind: input, shape index: {}]
  %s1 = inlined_call_operand.vmem [shape: f32[32,4], index: 1, kind: input, shape index: {}]
  %s2 = inlined_call_operand.vmem [shape: f32[32,1], index: 2, kind: input, shape index: {}]
  %s3 = inlined_call_operand.hbm [shape: f32[32,32], index: 3, kind: input, shape index: {}]
  %s4 = inlined_call_operand.vmem [shape: f32[32,1], index: 4, kind: input, shape index: {}]
  %s5 = inlined_call_operand.vmem [shape: bf16[128,128], index: 5, kind: input, shape index: {}]
  %s6 = inlined_call_operand.hbm [shape: bf16[128,128], index: 6, kind: input, shape index: {}]
  %s7 = inlined_call_operand.vmem [shape: bf16[128,128], index: 7, kind: input, shape index: {}]
  %s8 = inlined_call_operand.hbm [shape: f32[32,128], index: 8, kind: output, shape index: {}]
  %s9 = sld [smem:[#allocation0]]
  $region54: #{tpu_custom_call.1} parent=0
    _
  %s11 = ssub.s32 1, %s9
  %s12 = scalar_select 0, %s11, %s9
  $region1: #{tpu_custom_call.1} parent=0
    #allocation2 [shape = 'u8[2048]{0}', space=vmem, size = 0x800, scoped, tag = 'input window, operand 0, single buffered']
    #allocation3 [shape = 's32[1]{0}', space=sflag, size = 0x4, scoped, tag = 'scoped memory for tpu_custom_call.1']
    #allocation4 [shape = 's32[1]{0}', space=sflag, size = 0x4, scoped, tag = 'scoped memory for tpu_custom_call.1']
    #allocation5 [shape = 'u8[16384]{0}', space=vmem, size = 0x4000, scoped, tag = 'input window, operand 3, single buffered']
    #allocation6 [shape = 's32[1]{0}', space=sflag, size = 0x4, scoped, tag = 'scoped memory for tpu_custom_call.1']
    #allocation7 [shape = 'u8[32768]{0}', space=vmem, size = 0x8000, scoped, tag = 'input window, operand 6, single buffered']
    #allocation8 [shape = 'u8[16384]{0}', space=vmem, size = 0x4000, scoped, tag = 'output window, operand 0, single buffered']
    %13 = vsyncpa [#allocation3], 0
    %14 = vsyncpa [#allocation6], 0
    %15 = vsyncpa [#allocation4], 0
    // Predicated region
    $region2: #{tpu_custom_call.1} parent=1 // pred_check
      _
    $region3: #{tpu_custom_call.1} parent=1 // pred_check_branch
      %17 = sbr.rel (0) target = $region5
    $region4: #{tpu_custom_call.1} parent=1 // pred_region
      %s19 = ssub.s32 64, 64
      %20 = vsyncadd [#allocation3], %s19
      %s22 = sshll.u32 [#allocation2], 4
      %s23 = int_to_ptr.vmem [resolvable:$true] %s22
      %25 = dma.hbm_to_vmem [thread:$0]  %s0, 64, %s23, [#allocation3]
    $region5: #{tpu_custom_call.1} parent=1 // pred_fallthru
      _
    // Predicated region
    $region6: #{tpu_custom_call.1} parent=1 // pred_check
      _
    $region7: #{tpu_custom_call.1} parent=1 // pred_check_branch
      %27 = sbr.rel (0) target = $region9
    $region8: #{tpu_custom_call.1} parent=1 // pred_region
      _
    $region9: #{tpu_custom_call.1} parent=1 // pred_fallthru
      _
    // Predicated region
    $region10: #{tpu_custom_call.1} parent=1 // pred_check
      _
    $region11: #{tpu_custom_call.1} parent=1 // pred_check_branch
      %29 = sbr.rel (0) target = $region13
    $region12: #{tpu_custom_call.1} parent=1 // pred_region
      _
    $region13: #{tpu_custom_call.1} parent=1 // pred_fallthru
      _
    // Predicated region
    $region14: #{tpu_custom_call.1} parent=1 // pred_check
      _
    $region15: #{tpu_custom_call.1} parent=1 // pred_check_branch
      %31 = sbr.rel (0) target = $region17
    $region16: #{tpu_custom_call.1} parent=1 // pred_region
      %s33 = ssub.s32 512, 512
      %34 = vsyncadd [#allocation6], %s33
      %s35 = sshll.u32 [#allocation5], 4
      %s36 = int_to_ptr.vmem [resolvable:$true] %s35
      %41 = dma.hbm_to_vmem [thread:$0]  %s3, 512, %s36, [#allocation6], 128, 128, 8
    $region17: #{tpu_custom_call.1} parent=1 // pred_fallthru
      _
    // Predicated region
    $region18: #{tpu_custom_call.1} parent=1 // pred_check
      _
    $region19: #{tpu_custom_call.1} parent=1 // pred_check_branch
      %43 = sbr.rel (0) target = $region21
    $region20: #{tpu_custom_call.1} parent=1 // pred_region
      _
    $region21: #{tpu_custom_call.1} parent=1 // pred_fallthru
      _
    // Predicated region
    $region22: #{tpu_custom_call.1} parent=1 // pred_check
      _
    $region23: #{tpu_custom_call.1} parent=1 // pred_check_branch
      %45 = sbr.rel (0) target = $region25
    $region24: #{tpu_custom_call.1} parent=1 // pred_region
      _
    $region25: #{tpu_custom_call.1} parent=1 // pred_fallthru
      _
    // Predicated region
    $region26: #{tpu_custom_call.1} parent=1 // pred_check
      _
    $region27: #{tpu_custom_call.1} parent=1 // pred_check_branch
      %47 = sbr.rel (0) target = $region29
    $region28: #{tpu_custom_call.1} parent=1 // pred_region
      %s49 = ssub.s32 1024, 1024
      %50 = vsyncadd [#allocation6], %s49
      %s51 = sshll.u32 [#allocation7], 4
      %s52 = int_to_ptr.vmem [resolvable:$true] %s51
      %57 = dma.hbm_to_vmem [thread:$0]  %s6, 1024, %s52, [#allocation6], 64, 64, 4
    $region29: #{tpu_custom_call.1} parent=1 // pred_fallthru
      _
    // Predicated region
    $region30: #{tpu_custom_call.1} parent=1 // pred_check
      _
    $region31: #{tpu_custom_call.1} parent=1 // pred_check_branch
      %59 = sbr.rel (0) target = $region33
    $region32: #{tpu_custom_call.1} parent=1 // pred_region
      _
    $region33: #{tpu_custom_call.1} parent=1 // pred_fallthru
      _
    // Predicated region
    $region34: #{tpu_custom_call.1} parent=1 // pred_check
      _
    $region35: #{tpu_custom_call.1} parent=1 // pred_check_branch
      %61 = sbr.rel (0) target = $region37
    $region36: #{tpu_custom_call.1} parent=1 // pred_region
      %62 = dma.done [#allocation3], 64
    $region37: #{tpu_custom_call.1} parent=1 // pred_fallthru
      _
    // Predicated region
    $region38: #{tpu_custom_call.1} parent=1 // pred_check
      _
    $region39: #{tpu_custom_call.1} parent=1 // pred_check_branch
      %64 = sbr.rel (0) target = $region41
    $region40: #{tpu_custom_call.1} parent=1 // pred_region
      %65 = dma.done [#allocation6], 512
    $region41: #{tpu_custom_call.1} parent=1 // pred_fallthru
      _
    // Predicated region
    $region42: #{tpu_custom_call.1} parent=1 // pred_check
      _
    $region43: #{tpu_custom_call.1} parent=1 // pred_check_branch
      %67 = sbr.rel (0) target = $region45
    $region44: #{tpu_custom_call.1} parent=1 // pred_region
      %68 = dma.done [#allocation6], 1024
    $region45: #{tpu_custom_call.1} parent=1 // pred_fallthru
      _
    %v69 = vld [vmem:[#allocation2] sm:$0xf]
    %v70 = vld [vmem:[%s1] sm:$0xff]
    %v71 = vld [vmem:[%s1 + $0x8] sm:$0xff]
    %v72 = vld [vmem:[%s1 + $0x10] sm:$0xff]
    %v73 = vld [vmem:[%s1 + $0x18] sm:$0xff]
    %75 = vset.pattern.permute.xlu0 0
    %76 = vperm.xlu0 %75, %v70
    %v77 = vpop.permute.xlu0 %76
    %80 = vset.pattern.permute.xlu0 0
    %81 = vperm.xlu0 %80, %v71
    %v82 = vpop.permute.xlu0 %81
    %85 = vset.pattern.permute.xlu0 0
    %86 = vperm.xlu0 %85, %v72
    %v87 = vpop.permute.xlu0 %86
    %90 = vset.pattern.permute.xlu0 0
    %91 = vperm.xlu0 %90, %v73
    %v92 = vpop.permute.xlu0 %91
    %v94 = vlaneseq
    %v95 = vshrl.u32 %v94, 7
    %v96 = vsub.s32 0, %v95
    %v97 = vrot.slane %v69, %v96
    %v98 = vmul.f32 %v77, %v97
    %v99 = vmul.f32 %v82, %v97
    %v100 = vmul.f32 %v87, %v97
    %v101 = vmul.f32 %v92, %v97
    %102 = vset.pattern.permute.xlu0 1
    %103 = vperm.xlu0 %102, %v70
    %v104 = vpop.permute.xlu0 %103
    %106 = vset.pattern.permute.xlu0 1
    %107 = vperm.xlu0 %106, %v71
    %v108 = vpop.permute.xlu0 %107
    %110 = vset.pattern.permute.xlu0 1
    %111 = vperm.xlu0 %110, %v72
    %v112 = vpop.permute.xlu0 %111
    %114 = vset.pattern.permute.xlu0 1
    %115 = vperm.xlu0 %114, %v73
    %v116 = vpop.permute.xlu0 %115
    %v118 = vlaneseq
    %v119 = vshrl.u32 %v118, 7
    %v120 = vsub.s32 1, %v119
    %v121 = vrot.slane %v69, %v120
    %v122 = vmul.f32 %v104, %v121
    %v123 = vmul.f32 %v108, %v121
    %v124 = vmul.f32 %v112, %v121
    %v125 = vmul.f32 %v116, %v121
    %v126 = vadd.f32 %v98, %v122
    %v127 = vadd.f32 %v99, %v123
    %v128 = vadd.f32 %v100, %v124
    %v129 = vadd.f32 %v101, %v125
    %130 = vset.pattern.permute.xlu0 2
    %131 = vperm.xlu0 %130, %v70
    %v132 = vpop.permute.xlu0 %131
    %134 = vset.pattern.permute.xlu0 2
    %135 = vperm.xlu0 %134, %v71
    %v136 = vpop.permute.xlu0 %135
    %138 = vset.pattern.permute.xlu0 2
    %139 = vperm.xlu0 %138, %v72
    %v140 = vpop.permute.xlu0 %139
    %142 = vset.pattern.permute.xlu0 2
    %143 = vperm.xlu0 %142, %v73
    %v144 = vpop.permute.xlu0 %143
    %v146 = vlaneseq
    %v147 = vshrl.u32 %v146, 7
    %v148 = vsub.s32 2, %v147
    %v149 = vrot.slane %v69, %v148
    %v150 = vmul.f32 %v132, %v149
    %v151 = vmul.f32 %v136, %v149
    %v152 = vmul.f32 %v140, %v149
    %v153 = vmul.f32 %v144, %v149
    %v154 = vadd.f32 %v126, %v150
    %v155 = vadd.f32 %v127, %v151
    %v156 = vadd.f32 %v128, %v152
    %v157 = vadd.f32 %v129, %v153
    %158 = vset.pattern.permute.xlu0 3
    %159 = vperm.xlu0 %158, %v70
    %v160 = vpop.permute.xlu0 %159
    %162 = vset.pattern.permute.xlu0 3
    %163 = vperm.xlu0 %162, %v71
    %v164 = vpop.permute.xlu0 %163
    %166 = vset.pattern.permute.xlu0 3
    %167 = vperm.xlu0 %166, %v72
    %v168 = vpop.permute.xlu0 %167
    %170 = vset.pattern.permute.xlu0 3
    %171 = vperm.xlu0 %170, %v73
    %v172 = vpop.permute.xlu0 %171
    %v174 = vlaneseq
    %v175 = vshrl.u32 %v174, 7
    %v176 = vsub.s32 3, %v175
    %v177 = vrot.slane %v69, %v176
    %v178 = vmul.f32 %v160, %v177
    %v179 = vmul.f32 %v164, %v177
    %v180 = vmul.f32 %v168, %v177
    %v181 = vmul.f32 %v172, %v177
    %v182 = vadd.f32 %v154, %v178
    %v183 = vadd.f32 %v155, %v179
    %v184 = vadd.f32 %v156, %v180
    %v185 = vadd.f32 %v157, %v181
    %v186 = vld [vmem:[%s2] sm:$0xff]
    %v187 = vld [vmem:[%s2 + $0x8] sm:$0xff]
    %v188 = vld [vmem:[%s2 + $0x10] sm:$0xff]
    %v189 = vld [vmem:[%s2 + $0x18] sm:$0xff]
    %191 = vset.pattern.permute.xlu0 0
    %192 = vperm.xlu0 %191, %v186
    %v193 = vpop.permute.xlu0 %192
    %196 = vset.pattern.permute.xlu0 0
    %197 = vperm.xlu0 %196, %v187
    %v198 = vpop.permute.xlu0 %197
    %201 = vset.pattern.permute.xlu0 0
    %202 = vperm.xlu0 %201, %v188
    %v203 = vpop.permute.xlu0 %202
    %206 = vset.pattern.permute.xlu0 0
    %207 = vperm.xlu0 %206, %v189
    %v208 = vpop.permute.xlu0 %207
    %v210 = vadd.f32 %v182, %v193
    %v211 = vadd.f32 %v183, %v198
    %v212 = vadd.f32 %v184, %v203
    %v213 = vadd.f32 %v185, %v208
    %v214 = vmax.f32 %v210, 0.0
    %v215 = vmax.f32 %v211, 0.0
    %v216 = vmax.f32 %v212, 0.0
    %v217 = vmax.f32 %v213, 0.0
    %v218 = vld [vmem:[#allocation5] sm:$0xff]
    %v219 = vld [vmem:[#allocation5 + $0x8] sm:$0xff]
    %v220 = vld [vmem:[#allocation5 + $0x10] sm:$0xff]
    %v221 = vld [vmem:[#allocation5 + $0x18] sm:$0xff]
    %v222 = vld [vmem:[%s5] sm:$0xf]
    %v223 = vld [vmem:[%s5 + $0x4] sm:$0xf]
    %v224 = vld [vmem:[%s5 + $0x8] sm:$0xf]
    %v225 = vld [vmem:[%s5 + $0xc] sm:$0xf]
    %v226 = vld [vmem:[%s5 + $0x10] sm:$0xf]
    %v227 = vld [vmem:[%s5 + $0x14] sm:$0xf]
    %v228 = vld [vmem:[%s5 + $0x18] sm:$0xf]
    %v229 = vld [vmem:[%s5 + $0x1c] sm:$0xf]
    %v230 = vld [vmem:[%s5 + $0x20] sm:$0xf]
    %v231 = vld [vmem:[%s5 + $0x24] sm:$0xf]
    %v232 = vld [vmem:[%s5 + $0x28] sm:$0xf]
    %v233 = vld [vmem:[%s5 + $0x2c] sm:$0xf]
    %v234 = vld [vmem:[%s5 + $0x30] sm:$0xf]
    %v235 = vld [vmem:[%s5 + $0x34] sm:$0xf]
    %v236 = vld [vmem:[%s5 + $0x38] sm:$0xf]
    %v237 = vld [vmem:[%s5 + $0x3c] sm:$0xf]
    %v238 = vunpack.c.l.bf16 %v222
    %v239 = vunpack.c.l.bf16 %v223
    %v240 = vunpack.c.l.bf16 %v224
    %v241 = vunpack.c.l.bf16 %v225
    %v242 = vunpack.c.l.bf16 %v226
    %v243 = vunpack.c.l.bf16 %v227
    %v244 = vunpack.c.l.bf16 %v228
    %v245 = vunpack.c.l.bf16 %v229
    %v246 = vunpack.c.l.bf16 %v230
    %v247 = vunpack.c.l.bf16 %v231
    %v248 = vunpack.c.l.bf16 %v232
    %v249 = vunpack.c.l.bf16 %v233
    %v250 = vunpack.c.l.bf16 %v234
    %v251 = vunpack.c.l.bf16 %v235
    %v252 = vunpack.c.l.bf16 %v236
    %v253 = vunpack.c.l.bf16 %v237
    %254 = vmatprep.subr.mxu0 0.0
    %255 = vmatpush1.msra.mxu0 %v238
    %256 = vmatprep.subr.mxu0 0.0
    %257 = vmatpush1.msra.mxu0 %v239
    %258 = vmatprep.subr.mxu0 0.0
    %259 = vmatpush1.msra.mxu0 %v240
    %260 = vmatprep.subr.mxu0 0.0
    %261 = vmatpush1.msra.mxu0 %v241
    %262 = vmatprep.subr.mxu0 0.0
    %263 = vmatpush1.msra.mxu0 %v242
    %264 = vmatprep.subr.mxu0 0.0
    %265 = vmatpush1.msra.mxu0 %v243
    %266 = vmatprep.subr.mxu0 0.0
    %267 = vmatpush1.msra.mxu0 %v244
    %268 = vmatprep.subr.mxu0 0.0
    %269 = vmatpush1.msra.mxu0 %v245
    %270 = vmatprep.subr.mxu0 0.0
    %271 = vmatpush1.msra.mxu0 %v246
    %272 = vmatprep.subr.mxu0 0.0
    %273 = vmatpush1.msra.mxu0 %v247
    %274 = vmatprep.subr.mxu0 0.0
    %275 = vmatpush1.msra.mxu0 %v248
    %276 = vmatprep.subr.mxu0 0.0
    %277 = vmatpush1.msra.mxu0 %v249
    %278 = vmatprep.subr.mxu0 0.0
    %279 = vmatpush1.msra.mxu0 %v250
    %280 = vmatprep.subr.mxu0 0.0
    %281 = vmatpush1.msra.mxu0 %v251
    %282 = vmatprep.subr.mxu0 0.0
    %283 = vmatpush1.msra.mxu0 %v252
    %284 = vmatprep.subr.mxu0 0.0
    %285 = vmatpush1.msra.mxu0 %v253
    %286 = vmatprep.subr.mxu0 0.0
    %287 = vmatpush1.msra.mxu0 0.0
    %288 = vmatprep.subr.mxu0 0.0
    %289 = vmatpush1.msra.mxu0 0.0
    %290 = vmatprep.subr.mxu0 0.0
    %291 = vmatpush1.msra.mxu0 0.0
    %292 = vmatprep.subr.mxu0 0.0
    %293 = vmatpush1.msra.mxu0 0.0
    %294 = vmatprep.subr.mxu0 0.0
    %295 = vmatpush1.msra.mxu0 0.0
    %296 = vmatprep.subr.mxu0 0.0
    %297 = vmatpush1.msra.mxu0 0.0
    %298 = vmatprep.subr.mxu0 0.0
    %299 = vmatpush1.msra.mxu0 0.0
    %300 = vmatprep.subr.mxu0 0.0
    %301 = vmatpush1.msra.mxu0 0.0
    %302 = vmatprep.subr.mxu0 0.0
    %303 = vmatpush1.msra.mxu0 0.0
    %304 = vmatprep.subr.mxu0 0.0
    %305 = vmatpush1.msra.mxu0 0.0
    %306 = vmatprep.subr.mxu0 0.0
    %307 = vmatpush1.msra.mxu0 0.0
    %308 = vmatprep.subr.mxu0 0.0
    %309 = vmatpush1.msra.mxu0 0.0
    %310 = vmatprep.subr.mxu0 0.0
    %311 = vmatpush1.msra.mxu0 0.0
    %312 = vmatprep.subr.mxu0 0.0
    %313 = vmatpush1.msra.mxu0 0.0
    %314 = vmatprep.subr.mxu0 0.0
    %315 = vmatpush1.msra.mxu0 0.0
    %316 = vmatprep.subr.mxu0 0.0
    %317 = vmatpush1.msra.mxu0 0.0
    %318 = vmatprep.mubr.f32.mxu0 0.0
    %319 = vmatmul.mubr.f32.gmra.mrb[0].mxu0 %v215
    %v320 = vpop.f32.mrb[0].mxu0
    %v321 = vadd.f32 0.0, %v320
    %v322 = vpop.f32.mrb[0].mxu0
    %323 = vdwg.mxu0
    %v324 = vmul.f32 %v321, 0.25
    %v325 = vld [vmem:[#allocation7] sm:$0xf]
    %v326 = vld [vmem:[#allocation7 + $0x4] sm:$0xf]
    %v327 = vld [vmem:[#allocation7 + $0x8] sm:$0xf]
    %v328 = vld [vmem:[#allocation7 + $0xc] sm:$0xf]
    %v329 = vld [vmem:[#allocation7 + $0x10] sm:$0xf]
    %v330 = vld [vmem:[#allocation7 + $0x14] sm:$0xf]
    %v331 = vld [vmem:[#allocation7 + $0x18] sm:$0xf]
    %v332 = vld [vmem:[#allocation7 + $0x1c] sm:$0xf]
    %v333 = vld [vmem:[#allocation7 + $0x20] sm:$0xf]
    %v334 = vld [vmem:[#allocation7 + $0x24] sm:$0xf]
    %v335 = vld [vmem:[#allocation7 + $0x28] sm:$0xf]
    %v336 = vld [vmem:[#allocation7 + $0x2c] sm:$0xf]
    %v337 = vld [vmem:[#allocation7 + $0x30] sm:$0xf]
    %v338 = vld [vmem:[#allocation7 + $0x34] sm:$0xf]
    %v339 = vld [vmem:[#allocation7 + $0x38] sm:$0xf]
    %v340 = vld [vmem:[#allocation7 + $0x3c] sm:$0xf]
    %v341 = vunpack.c.l.bf16 %v325
    %v342 = vunpack.c.l.bf16 %v326
    %v343 = vunpack.c.l.bf16 %v327
    %v344 = vunpack.c.l.bf16 %v328
    %v345 = vunpack.c.l.bf16 %v329
    %v346 = vunpack.c.l.bf16 %v330
    %v347 = vunpack.c.l.bf16 %v331
    %v348 = vunpack.c.l.bf16 %v332
    %v349 = vunpack.c.l.bf16 %v333
    %v350 = vunpack.c.l.bf16 %v334
    %v351 = vunpack.c.l.bf16 %v335
    %v352 = vunpack.c.l.bf16 %v336
    %v353 = vunpack.c.l.bf16 %v337
    %v354 = vunpack.c.l.bf16 %v338
    %v355 = vunpack.c.l.bf16 %v339
    %v356 = vunpack.c.l.bf16 %v340
    %357 = vmatprep.subr.mxu0 0.0
    %358 = vmatpush1.msra.mxu0 %v341
    %359 = vmatprep.subr.mxu0 0.0
    %360 = vmatpush1.msra.mxu0 %v342
    %361 = vmatprep.subr.mxu0 0.0
    %362 = vmatpush1.msra.mxu0 %v343
    %363 = vmatprep.subr.mxu0 0.0
    %364 = vmatpush1.msra.mxu0 %v344
    %365 = vmatprep.subr.mxu0 0.0
    %366 = vmatpush1.msra.mxu0 %v345
    %367 = vmatprep.subr.mxu0 0.0
    %368 = vmatpush1.msra.mxu0 %v346
    %369 = vmatprep.subr.mxu0 0.0
    %370 = vmatpush1.msra.mxu0 %v347
    %371 = vmatprep.subr.mxu0 0.0
    %372 = vmatpush1.msra.mxu0 %v348
    %373 = vmatprep.subr.mxu0 0.0
    %374 = vmatpush1.msra.mxu0 %v349
    %375 = vmatprep.subr.mxu0 0.0
    %376 = vmatpush1.msra.mxu0 %v350
    %377 = vmatprep.subr.mxu0 0.0
    %378 = vmatpush1.msra.mxu0 %v351
    %379 = vmatprep.subr.mxu0 0.0
    %380 = vmatpush1.msra.mxu0 %v352
    %381 = vmatprep.subr.mxu0 0.0
    %382 = vmatpush1.msra.mxu0 %v353
    %383 = vmatprep.subr.mxu0 0.0
    %384 = vmatpush1.msra.mxu0 %v354
    %385 = vmatprep.subr.mxu0 0.0
    %386 = vmatpush1.msra.mxu0 %v355
    %387 = vmatprep.subr.mxu0 0.0
    %388 = vmatpush1.msra.mxu0 %v356
    %389 = vmatprep.subr.mxu0 0.0
    %390 = vmatpush1.msra.mxu0 0.0
    %391 = vmatprep.subr.mxu0 0.0
    %392 = vmatpush1.msra.mxu0 0.0
    %393 = vmatprep.subr.mxu0 0.0
    %394 = vmatpush1.msra.mxu0 0.0
    %395 = vmatprep.subr.mxu0 0.0
    %396 = vmatpush1.msra.mxu0 0.0
    %397 = vmatprep.subr.mxu0 0.0
    %398 = vmatpush1.msra.mxu0 0.0
    %399 = vmatprep.subr.mxu0 0.0
    %400 = vmatpush1.msra.mxu0 0.0
    %401 = vmatprep.subr.mxu0 0.0
    %402 = vmatpush1.msra.mxu0 0.0
    %403 = vmatprep.subr.mxu0 0.0
    %404 = vmatpush1.msra.mxu0 0.0
    %405 = vmatprep.subr.mxu0 0.0
    %406 = vmatpush1.msra.mxu0 0.0
    %407 = vmatprep.subr.mxu0 0.0
    %408 = vmatpush1.msra.mxu0 0.0
    %409 = vmatprep.subr.mxu0 0.0
    %410 = vmatpush1.msra.mxu0 0.0
    %411 = vmatprep.subr.mxu0 0.0
    %412 = vmatpush1.msra.mxu0 0.0
    %413 = vmatprep.subr.mxu0 0.0
    %414 = vmatpush1.msra.mxu0 0.0
    %415 = vmatprep.subr.mxu0 0.0
    %416 = vmatpush1.msra.mxu0 0.0
    %417 = vmatprep.subr.mxu0 0.0
    %418 = vmatpush1.msra.mxu0 0.0
    %419 = vmatprep.subr.mxu0 0.0
    %420 = vmatpush1.msra.mxu0 0.0
    %421 = vmatprep.mubr.f32.mxu0 0.0
    %422 = vmatmul.mubr.f32.gmra.mrb[0].mxu0 %v216
    %v423 = vpop.f32.mrb[0].mxu0
    %v424 = vadd.f32 0.0, %v423
    %v425 = vpop.f32.mrb[0].mxu0
    %426 = vdwg.mxu0
    %v427 = vmul.f32 %v424, 0.25
    %v428 = vld [vmem:[%s7] sm:$0xf]
    %v429 = vld [vmem:[%s7 + $0x4] sm:$0xf]
    %v430 = vld [vmem:[%s7 + $0x8] sm:$0xf]
    %v431 = vld [vmem:[%s7 + $0xc] sm:$0xf]
    %v432 = vld [vmem:[%s7 + $0x10] sm:$0xf]
    %v433 = vld [vmem:[%s7 + $0x14] sm:$0xf]
    %v434 = vld [vmem:[%s7 + $0x18] sm:$0xf]
    %v435 = vld [vmem:[%s7 + $0x1c] sm:$0xf]
    %v436 = vld [vmem:[%s7 + $0x20] sm:$0xf]
    %v437 = vld [vmem:[%s7 + $0x24] sm:$0xf]
    %v438 = vld [vmem:[%s7 + $0x28] sm:$0xf]
    %v439 = vld [vmem:[%s7 + $0x2c] sm:$0xf]
    %v440 = vld [vmem:[%s7 + $0x30] sm:$0xf]
    %v441 = vld [vmem:[%s7 + $0x34] sm:$0xf]
    %v442 = vld [vmem:[%s7 + $0x38] sm:$0xf]
    %v443 = vld [vmem:[%s7 + $0x3c] sm:$0xf]
    %v444 = vunpack.c.l.bf16 %v428
    %v445 = vunpack.c.l.bf16 %v429
    %v446 = vunpack.c.l.bf16 %v430
    %v447 = vunpack.c.l.bf16 %v431
    %v448 = vunpack.c.l.bf16 %v432
    %v449 = vunpack.c.l.bf16 %v433
    %v450 = vunpack.c.l.bf16 %v434
    %v451 = vunpack.c.l.bf16 %v435
    %v452 = vunpack.c.l.bf16 %v436
    %v453 = vunpack.c.l.bf16 %v437
    %v454 = vunpack.c.l.bf16 %v438
    %v455 = vunpack.c.l.bf16 %v439
    %v456 = vunpack.c.l.bf16 %v440
    %v457 = vunpack.c.l.bf16 %v441
    %v458 = vunpack.c.l.bf16 %v442
    %v459 = vunpack.c.l.bf16 %v443
    %460 = vmatprep.subr.mxu0 0.0
    %461 = vmatpush1.msra.mxu0 %v444
    %462 = vmatprep.subr.mxu0 0.0
    %463 = vmatpush1.msra.mxu0 %v445
    %464 = vmatprep.subr.mxu0 0.0
    %465 = vmatpush1.msra.mxu0 %v446
    %466 = vmatprep.subr.mxu0 0.0
    %467 = vmatpush1.msra.mxu0 %v447
    %468 = vmatprep.subr.mxu0 0.0
    %469 = vmatpush1.msra.mxu0 %v448
    %470 = vmatprep.subr.mxu0 0.0
    %471 = vmatpush1.msra.mxu0 %v449
    %472 = vmatprep.subr.mxu0 0.0
    %473 = vmatpush1.msra.mxu0 %v450
    %474 = vmatprep.subr.mxu0 0.0
    %475 = vmatpush1.msra.mxu0 %v451
    %476 = vmatprep.subr.mxu0 0.0
    %477 = vmatpush1.msra.mxu0 %v452
    %478 = vmatprep.subr.mxu0 0.0
    %479 = vmatpush1.msra.mxu0 %v453
    %480 = vmatprep.subr.mxu0 0.0
    %481 = vmatpush1.msra.mxu0 %v454
    %482 = vmatprep.subr.mxu0 0.0
    %483 = vmatpush1.msra.mxu0 %v455
    %484 = vmatprep.subr.mxu0 0.0
    %485 = vmatpush1.msra.mxu0 %v456
    %486 = vmatprep.subr.mxu0 0.0
    %487 = vmatpush1.msra.mxu0 %v457
    %488 = vmatprep.subr.mxu0 0.0
    %489 = vmatpush1.msra.mxu0 %v458
    %490 = vmatprep.subr.mxu0 0.0
    %491 = vmatpush1.msra.mxu0 %v459
    %492 = vmatprep.subr.mxu0 0.0
    %493 = vmatpush1.msra.mxu0 0.0
    %494 = vmatprep.subr.mxu0 0.0
    %495 = vmatpush1.msra.mxu0 0.0
    %496 = vmatprep.subr.mxu0 0.0
    %497 = vmatpush1.msra.mxu0 0.0
    %498 = vmatprep.subr.mxu0 0.0
    %499 = vmatpush1.msra.mxu0 0.0
    %500 = vmatprep.subr.mxu0 0.0
    %501 = vmatpush1.msra.mxu0 0.0
    %502 = vmatprep.subr.mxu0 0.0
    %503 = vmatpush1.msra.mxu0 0.0
    %504 = vmatprep.subr.mxu0 0.0
    %505 = vmatpush1.msra.mxu0 0.0
    %506 = vmatprep.subr.mxu0 0.0
    %507 = vmatpush1.msra.mxu0 0.0
    %508 = vmatprep.subr.mxu0 0.0
    %509 = vmatpush1.msra.mxu0 0.0
    %510 = vmatprep.subr.mxu0 0.0
    %511 = vmatpush1.msra.mxu0 0.0
    %512 = vmatprep.subr.mxu0 0.0
    %513 = vmatpush1.msra.mxu0 0.0
    %514 = vmatprep.subr.mxu0 0.0
    %515 = vmatpush1.msra.mxu0 0.0
    %516 = vmatprep.subr.mxu0 0.0
    %517 = vmatpush1.msra.mxu0 0.0
    %518 = vmatprep.subr.mxu0 0.0
    %519 = vmatpush1.msra.mxu0 0.0
    %520 = vmatprep.subr.mxu0 0.0
    %521 = vmatpush1.msra.mxu0 0.0
    %522 = vmatprep.subr.mxu0 0.0
    %523 = vmatpush1.msra.mxu0 0.0
    %524 = vmatprep.mubr.f32.mxu0 0.0
    %525 = vmatmul.mubr.f32.gmra.mrb[0].mxu0 %v217
    %v526 = vpop.f32.mrb[0].mxu0
    %v527 = vadd.f32 0.0, %v526
    %v528 = vpop.f32.mrb[0].mxu0
    %529 = vdwg.mxu0
    %v530 = vmul.f32 %v527, 0.0625
    %535 = vrot.lane.b32.xlu0 %v218, 120
    %v536 = vpop.permute.xlu0 %535
    %537 = vrot.lane.b32.xlu0 %v219, 120
    %v538 = vpop.permute.xlu0 %537
    %539 = vrot.lane.b32.xlu0 %v220, 120
    %v540 = vpop.permute.xlu0 %539
    %541 = vrot.lane.b32.xlu0 %v221, 120
    %v542 = vpop.permute.xlu0 %541
    %vm543 = vcmask 64512
    %v544 = vsel %vm543, %v536, 0
    %v546 = vsel %vm543, %v538, 0
    %v548 = vsel %vm543, %v540, 0
    %v550 = vsel %vm543, %v542, 0
    %552 = vmatprep.subr.mxu0 0.0
    %553 = vmatpush1.msra.mxu0 %v324
    %554 = vmatprep.subr.mxu0 0.0
    %555 = vmatpush1.msra.mxu0 0.0
    %556 = vmatprep.subr.mxu0 0.0
    %557 = vmatpush1.msra.mxu0 0.0
    %558 = vmatprep.subr.mxu0 0.0
    %559 = vmatpush1.msra.mxu0 0.0
    %560 = vmatprep.subr.mxu0 0.0
    %561 = vmatpush1.msra.mxu0 0.0
    %562 = vmatprep.subr.mxu0 0.0
    %563 = vmatpush1.msra.mxu0 0.0
    %564 = vmatprep.subr.mxu0 0.0
    %565 = vmatpush1.msra.mxu0 0.0
    %566 = vmatprep.subr.mxu0 0.0
    %567 = vmatpush1.msra.mxu0 0.0
    %568 = vmatprep.subr.mxu0 0.0
    %569 = vmatpush1.msra.mxu0 0.0
    %570 = vmatprep.subr.mxu0 0.0
    %571 = vmatpush1.msra.mxu0 0.0
    %572 = vmatprep.subr.mxu0 0.0
    %573 = vmatpush1.msra.mxu0 0.0
    %574 = vmatprep.subr.mxu0 0.0
    %575 = vmatpush1.msra.mxu0 0.0
    %576 = vmatprep.subr.mxu0 0.0
    %577 = vmatpush1.msra.mxu0 0.0
    %578 = vmatprep.subr.mxu0 0.0
    %579 = vmatpush1.msra.mxu0 0.0
    %580 = vmatprep.subr.mxu0 0.0
    %581 = vmatpush1.msra.mxu0 0.0
    %582 = vmatprep.subr.mxu0 0.0
    %583 = vmatpush1.msra.mxu0 0.0
    %584 = vmatprep.subr.mxu0 0.0
    %585 = vmatpush1.msra.mxu0 0.0
    %586 = vmatprep.subr.mxu0 0.0
    %587 = vmatpush1.msra.mxu0 0.0
    %588 = vmatprep.subr.mxu0 0.0
    %589 = vmatpush1.msra.mxu0 0.0
    %590 = vmatprep.subr.mxu0 0.0
    %591 = vmatpush1.msra.mxu0 0.0
    %592 = vmatprep.subr.mxu0 0.0
    %593 = vmatpush1.msra.mxu0 0.0
    %594 = vmatprep.subr.mxu0 0.0
    %595 = vmatpush1.msra.mxu0 0.0
    %596 = vmatprep.subr.mxu0 0.0
    %597 = vmatpush1.msra.mxu0 0.0
    %598 = vmatprep.subr.mxu0 0.0
    %599 = vmatpush1.msra.mxu0 0.0
    %600 = vmatprep.subr.mxu0 0.0
    %601 = vmatpush1.msra.mxu0 0.0
    %602 = vmatprep.subr.mxu0 0.0
    %603 = vmatpush1.msra.mxu0 0.0
    %604 = vmatprep.subr.mxu0 0.0
    %605 = vmatpush1.msra.mxu0 0.0
    %606 = vmatprep.subr.mxu0 0.0
    %607 = vmatpush1.msra.mxu0 0.0
    %608 = vmatprep.subr.mxu0 0.0
    %609 = vmatpush1.msra.mxu0 0.0
    %610 = vmatprep.subr.mxu0 0.0
    %611 = vmatpush1.msra.mxu0 0.0
    %612 = vmatprep.subr.mxu0 0.0
    %613 = vmatpush1.msra.mxu0 0.0
    %614 = vmatprep.subr.mxu0 0.0
    %615 = vmatpush1.msra.mxu0 0.0
    %616 = vmatprep.mubr.f32.mxu0 0.0
    %617 = vmatmul.mubr.f32.gmra.mrb[0].mxu0 %v544
    %v618 = vpop.f32.mrb[0].mxu0
    %v619 = vadd.f32 0.0, %v618
    %v620 = vpop.f32.mrb[0].mxu0
    %621 = vmatprep.mubr.f32.mxu0 0.0
    %622 = vmatmul.mubr.f32.gmra.mrb[0].mxu0 %v546
    %v623 = vpop.f32.mrb[0].mxu0
    %v624 = vadd.f32 0.0, %v623
    %v625 = vpop.f32.mrb[0].mxu0
    %626 = vmatprep.mubr.f32.mxu0 0.0
    %627 = vmatmul.mubr.f32.gmra.mrb[0].mxu0 %v548
    %v628 = vpop.f32.mrb[0].mxu0
    %v629 = vadd.f32 0.0, %v628
    %v630 = vpop.f32.mrb[0].mxu0
    %631 = vmatprep.mubr.f32.mxu0 0.0
    %632 = vmatmul.mubr.f32.gmra.mrb[0].mxu0 %v550
    %v633 = vpop.f32.mrb[0].mxu0
    %v634 = vadd.f32 0.0, %v633
    %v635 = vpop.f32.mrb[0].mxu0
    %636 = vdwg.mxu0
    %v637 = vsel %vm543, %v218, 0
    %v639 = vsel %vm543, %v219, 0
    %v641 = vsel %vm543, %v220, 0
    %v643 = vsel %vm543, %v221, 0
    %645 = vmatprep.subr.mxu0 0.0
    %646 = vmatpush1.msra.mxu0 %v214
    %647 = vmatprep.subr.mxu0 0.0
    %648 = vmatpush1.msra.mxu0 0.0
    %649 = vmatprep.subr.mxu0 0.0
    %650 = vmatpush1.msra.mxu0 0.0
    %651 = vmatprep.subr.mxu0 0.0
    %652 = vmatpush1.msra.mxu0 0.0
    %653 = vmatprep.subr.mxu0 0.0
    %654 = vmatpush1.msra.mxu0 0.0
    %655 = vmatprep.subr.mxu0 0.0
    %656 = vmatpush1.msra.mxu0 0.0
    %657 = vmatprep.subr.mxu0 0.0
    %658 = vmatpush1.msra.mxu0 0.0
    %659 = vmatprep.subr.mxu0 0.0
    %660 = vmatpush1.msra.mxu0 0.0
    %661 = vmatprep.subr.mxu0 0.0
    %662 = vmatpush1.msra.mxu0 0.0
    %663 = vmatprep.subr.mxu0 0.0
    %664 = vmatpush1.msra.mxu0 0.0
    %665 = vmatprep.subr.mxu0 0.0
    %666 = vmatpush1.msra.mxu0 0.0
    %667 = vmatprep.subr.mxu0 0.0
    %668 = vmatpush1.msra.mxu0 0.0
    %669 = vmatprep.subr.mxu0 0.0
    %670 = vmatpush1.msra.mxu0 0.0
    %671 = vmatprep.subr.mxu0 0.0
    %672 = vmatpush1.msra.mxu0 0.0
    %673 = vmatprep.subr.mxu0 0.0
    %674 = vmatpush1.msra.mxu0 0.0
    %675 = vmatprep.subr.mxu0 0.0
    %676 = vmatpush1.msra.mxu0 0.0
    %677 = vmatprep.subr.mxu0 0.0
    %678 = vmatpush1.msra.mxu0 0.0
    %679 = vmatprep.subr.mxu0 0.0
    %680 = vmatpush1.msra.mxu0 0.0
    %681 = vmatprep.subr.mxu0 0.0
    %682 = vmatpush1.msra.mxu0 0.0
    %683 = vmatprep.subr.mxu0 0.0
    %684 = vmatpush1.msra.mxu0 0.0
    %685 = vmatprep.subr.mxu0 0.0
    %686 = vmatpush1.msra.mxu0 0.0
    %687 = vmatprep.subr.mxu0 0.0
    %688 = vmatpush1.msra.mxu0 0.0
    %689 = vmatprep.subr.mxu0 0.0
    %690 = vmatpush1.msra.mxu0 0.0
    %691 = vmatprep.subr.mxu0 0.0
    %692 = vmatpush1.msra.mxu0 0.0
    %693 = vmatprep.subr.mxu0 0.0
    %694 = vmatpush1.msra.mxu0 0.0
    %695 = vmatprep.subr.mxu0 0.0
    %696 = vmatpush1.msra.mxu0 0.0
    %697 = vmatprep.subr.mxu0 0.0
    %698 = vmatpush1.msra.mxu0 0.0
    %699 = vmatprep.subr.mxu0 0.0
    %700 = vmatpush1.msra.mxu0 0.0
    %701 = vmatprep.subr.mxu0 0.0
    %702 = vmatpush1.msra.mxu0 0.0
    %703 = vmatprep.subr.mxu0 0.0
    %704 = vmatpush1.msra.mxu0 0.0
    %705 = vmatprep.subr.mxu0 0.0
    %706 = vmatpush1.msra.mxu0 0.0
    %707 = vmatprep.subr.mxu0 0.0
    %708 = vmatpush1.msra.mxu0 0.0
    %709 = vmatprep.mubr.f32.mxu0 0.0
    %710 = vmatmul.mubr.f32.gmra.mrb[0].mxu0 %v637
    %v711 = vpop.f32.mrb[0].mxu0
    %v712 = vadd.f32 %v619, %v711
    %v713 = vpop.f32.mrb[0].mxu0
    %714 = vmatprep.mubr.f32.mxu0 0.0
    %715 = vmatmul.mubr.f32.gmra.mrb[0].mxu0 %v639
    %v716 = vpop.f32.mrb[0].mxu0
    %v717 = vadd.f32 %v624, %v716
    %v718 = vpop.f32.mrb[0].mxu0
    %719 = vmatprep.mubr.f32.mxu0 0.0
    %720 = vmatmul.mubr.f32.gmra.mrb[0].mxu0 %v641
    %v721 = vpop.f32.mrb[0].mxu0
    %v722 = vadd.f32 %v629, %v721
    %v723 = vpop.f32.mrb[0].mxu0
    %724 = vmatprep.mubr.f32.mxu0 0.0
    %725 = vmatmul.mubr.f32.gmra.mrb[0].mxu0 %v643
    %v726 = vpop.f32.mrb[0].mxu0
    %v727 = vadd.f32 %v634, %v726
    %v728 = vpop.f32.mrb[0].mxu0
    %729 = vdwg.mxu0
    %730 = vrot.lane.b32.xlu0 %v218, 112
    %v731 = vpop.permute.xlu0 %730
    %732 = vrot.lane.b32.xlu0 %v219, 112
    %v733 = vpop.permute.xlu0 %732
    %734 = vrot.lane.b32.xlu0 %v220, 112
    %v735 = vpop.permute.xlu0 %734
    %736 = vrot.lane.b32.xlu0 %v221, 112
    %v737 = vpop.permute.xlu0 %736
    %v738 = vsel %vm543, %v731, 0
    %v740 = vsel %vm543, %v733, 0
    %v742 = vsel %vm543, %v735, 0
    %v744 = vsel %vm543, %v737, 0
    %746 = vmatprep.subr.mxu0 0.0
    %747 = vmatpush1.msra.mxu0 %v427
    %748 = vmatprep.subr.mxu0 0.0
    %749 = vmatpush1.msra.mxu0 0.0
    %750 = vmatprep.subr.mxu0 0.0
    %751 = vmatpush1.msra.mxu0 0.0
    %752 = vmatprep.subr.mxu0 0.0
    %753 = vmatpush1.msra.mxu0 0.0
    %754 = vmatprep.subr.mxu0 0.0
    %755 = vmatpush1.msra.mxu0 0.0
    %756 = vmatprep.subr.mxu0 0.0
    %757 = vmatpush1.msra.mxu0 0.0
    %758 = vmatprep.subr.mxu0 0.0
    %759 = vmatpush1.msra.mxu0 0.0
    %760 = vmatprep.subr.mxu0 0.0
    %761 = vmatpush1.msra.mxu0 0.0
    %762 = vmatprep.subr.mxu0 0.0
    %763 = vmatpush1.msra.mxu0 0.0
    %764 = vmatprep.subr.mxu0 0.0
    %765 = vmatpush1.msra.mxu0 0.0
    %766 = vmatprep.subr.mxu0 0.0
    %767 = vmatpush1.msra.mxu0 0.0
    %768 = vmatprep.subr.mxu0 0.0
    %769 = vmatpush1.msra.mxu0 0.0
    %770 = vmatprep.subr.mxu0 0.0
    %771 = vmatpush1.msra.mxu0 0.0
    %772 = vmatprep.subr.mxu0 0.0
    %773 = vmatpush1.msra.mxu0 0.0
    %774 = vmatprep.subr.mxu0 0.0
    %775 = vmatpush1.msra.mxu0 0.0
    %776 = vmatprep.subr.mxu0 0.0
    %777 = vmatpush1.msra.mxu0 0.0
    %778 = vmatprep.subr.mxu0 0.0
    %779 = vmatpush1.msra.mxu0 0.0
    %780 = vmatprep.subr.mxu0 0.0
    %781 = vmatpush1.msra.mxu0 0.0
    %782 = vmatprep.subr.mxu0 0.0
    %783 = vmatpush1.msra.mxu0 0.0
    %784 = vmatprep.subr.mxu0 0.0
    %785 = vmatpush1.msra.mxu0 0.0
    %786 = vmatprep.subr.mxu0 0.0
    %787 = vmatpush1.msra.mxu0 0.0
    %788 = vmatprep.subr.mxu0 0.0
    %789 = vmatpush1.msra.mxu0 0.0
    %790 = vmatprep.subr.mxu0 0.0
    %791 = vmatpush1.msra.mxu0 0.0
    %792 = vmatprep.subr.mxu0 0.0
    %793 = vmatpush1.msra.mxu0 0.0
    %794 = vmatprep.subr.mxu0 0.0
    %795 = vmatpush1.msra.mxu0 0.0
    %796 = vmatprep.subr.mxu0 0.0
    %797 = vmatpush1.msra.mxu0 0.0
    %798 = vmatprep.subr.mxu0 0.0
    %799 = vmatpush1.msra.mxu0 0.0
    %800 = vmatprep.subr.mxu0 0.0
    %801 = vmatpush1.msra.mxu0 0.0
    %802 = vmatprep.subr.mxu0 0.0
    %803 = vmatpush1.msra.mxu0 0.0
    %804 = vmatprep.subr.mxu0 0.0
    %805 = vmatpush1.msra.mxu0 0.0
    %806 = vmatprep.subr.mxu0 0.0
    %807 = vmatpush1.msra.mxu0 0.0
    %808 = vmatprep.subr.mxu0 0.0
    %809 = vmatpush1.msra.mxu0 0.0
    %810 = vmatprep.mubr.f32.mxu0 0.0
    %811 = vmatmul.mubr.f32.gmra.mrb[0].mxu0 %v738
    %v812 = vpop.f32.mrb[0].mxu0
    %v813 = vadd.f32 0.0, %v812
    %v814 = vpop.f32.mrb[0].mxu0
    %815 = vmatprep.mubr.f32.mxu0 0.0
    %816 = vmatmul.mubr.f32.gmra.mrb[0].mxu0 %v740
    %v817 = vpop.f32.mrb[0].mxu0
    %v818 = vadd.f32 0.0, %v817
    %v819 = vpop.f32.mrb[0].mxu0
    %820 = vmatprep.mubr.f32.mxu0 0.0
    %821 = vmatmul.mubr.f32.gmra.mrb[0].mxu0 %v742
    %v822 = vpop.f32.mrb[0].mxu0
    %v823 = vadd.f32 0.0, %v822
    %v824 = vpop.f32.mrb[0].mxu0
    %825 = vmatprep.mubr.f32.mxu0 0.0
    %826 = vmatmul.mubr.f32.gmra.mrb[0].mxu0 %v744
    %v827 = vpop.f32.mrb[0].mxu0
    %v828 = vadd.f32 0.0, %v827
    %v829 = vpop.f32.mrb[0].mxu0
    %830 = vdwg.mxu0
    %v831 = vadd.f32 %v712, %v813
    %v832 = vadd.f32 %v717, %v818
    %v833 = vadd.f32 %v722, %v823
    %v834 = vadd.f32 %v727, %v828
    %835 = vrot.lane.b32.xlu0 %v218, 104
    %v836 = vpop.permute.xlu0 %835
    %837 = vrot.lane.b32.xlu0 %v219, 104
    %v838 = vpop.permute.xlu0 %837
    %839 = vrot.lane.b32.xlu0 %v220, 104
    %v840 = vpop.permute.xlu0 %839
    %841 = vrot.lane.b32.xlu0 %v221, 104
    %v842 = vpop.permute.xlu0 %841
    %v843 = vsel %vm543, %v836, 0
    %v845 = vsel %vm543, %v838, 0
    %v847 = vsel %vm543, %v840, 0
    %v849 = vsel %vm543, %v842, 0
    %851 = vmatprep.subr.mxu0 0.0
    %852 = vmatpush1.msra.mxu0 %v530
    %853 = vmatprep.subr.mxu0 0.0
    %854 = vmatpush1.msra.mxu0 0.0
    %855 = vmatprep.subr.mxu0 0.0
    %856 = vmatpush1.msra.mxu0 0.0
    %857 = vmatprep.subr.mxu0 0.0
    %858 = vmatpush1.msra.mxu0 0.0
    %859 = vmatprep.subr.mxu0 0.0
    %860 = vmatpush1.msra.mxu0 0.0
    %861 = vmatprep.subr.mxu0 0.0
    %862 = vmatpush1.msra.mxu0 0.0
    %863 = vmatprep.subr.mxu0 0.0
    %864 = vmatpush1.msra.mxu0 0.0
    %865 = vmatprep.subr.mxu0 0.0
    %866 = vmatpush1.msra.mxu0 0.0
    %867 = vmatprep.subr.mxu0 0.0
    %868 = vmatpush1.msra.mxu0 0.0
    %869 = vmatprep.subr.mxu0 0.0
    %870 = vmatpush1.msra.mxu0 0.0
    %871 = vmatprep.subr.mxu0 0.0
    %872 = vmatpush1.msra.mxu0 0.0
    %873 = vmatprep.subr.mxu0 0.0
    %874 = vmatpush1.msra.mxu0 0.0
    %875 = vmatprep.subr.mxu0 0.0
    %876 = vmatpush1.msra.mxu0 0.0
    %877 = vmatprep.subr.mxu0 0.0
    %878 = vmatpush1.msra.mxu0 0.0
    %879 = vmatprep.subr.mxu0 0.0
    %880 = vmatpush1.msra.mxu0 0.0
    %881 = vmatprep.subr.mxu0 0.0
    %882 = vmatpush1.msra.mxu0 0.0
    %883 = vmatprep.subr.mxu0 0.0
    %884 = vmatpush1.msra.mxu0 0.0
    %885 = vmatprep.subr.mxu0 0.0
    %886 = vmatpush1.msra.mxu0 0.0
    %887 = vmatprep.subr.mxu0 0.0
    %888 = vmatpush1.msra.mxu0 0.0
    %889 = vmatprep.subr.mxu0 0.0
    %890 = vmatpush1.msra.mxu0 0.0
    %891 = vmatprep.subr.mxu0 0.0
    %892 = vmatpush1.msra.mxu0 0.0
    %893 = vmatprep.subr.mxu0 0.0
    %894 = vmatpush1.msra.mxu0 0.0
    %895 = vmatprep.subr.mxu0 0.0
    %896 = vmatpush1.msra.mxu0 0.0
    %897 = vmatprep.subr.mxu0 0.0
    %898 = vmatpush1.msra.mxu0 0.0
    %899 = vmatprep.subr.mxu0 0.0
    %900 = vmatpush1.msra.mxu0 0.0
    %901 = vmatprep.subr.mxu0 0.0
    %902 = vmatpush1.msra.mxu0 0.0
    %903 = vmatprep.subr.mxu0 0.0
    %904 = vmatpush1.msra.mxu0 0.0
    %905 = vmatprep.subr.mxu0 0.0
    %906 = vmatpush1.msra.mxu0 0.0
    %907 = vmatprep.subr.mxu0 0.0
    %908 = vmatpush1.msra.mxu0 0.0
    %909 = vmatprep.subr.mxu0 0.0
    %910 = vmatpush1.msra.mxu0 0.0
    %911 = vmatprep.subr.mxu0 0.0
    %912 = vmatpush1.msra.mxu0 0.0
    %913 = vmatprep.subr.mxu0 0.0
    %914 = vmatpush1.msra.mxu0 0.0
    %915 = vmatprep.mubr.f32.mxu0 0.0
    %916 = vmatmul.mubr.f32.gmra.mrb[0].mxu0 %v843
    %v917 = vpop.f32.mrb[0].mxu0
    %v918 = vadd.f32 0.0, %v917
    %v919 = vpop.f32.mrb[0].mxu0
    %920 = vmatprep.mubr.f32.mxu0 0.0
    %921 = vmatmul.mubr.f32.gmra.mrb[0].mxu0 %v845
    %v922 = vpop.f32.mrb[0].mxu0
    %v923 = vadd.f32 0.0, %v922
    %v924 = vpop.f32.mrb[0].mxu0
    %925 = vmatprep.mubr.f32.mxu0 0.0
    %926 = vmatmul.mubr.f32.gmra.mrb[0].mxu0 %v847
    %v927 = vpop.f32.mrb[0].mxu0
    %v928 = vadd.f32 0.0, %v927
    %v929 = vpop.f32.mrb[0].mxu0
    %930 = vmatprep.mubr.f32.mxu0 0.0
    %931 = vmatmul.mubr.f32.gmra.mrb[0].mxu0 %v849
    %v932 = vpop.f32.mrb[0].mxu0
    %v933 = vadd.f32 0.0, %v932
    %v934 = vpop.f32.mrb[0].mxu0
    %935 = vdwg.mxu0
    %v936 = vadd.f32 %v831, %v918
    %v937 = vadd.f32 %v832, %v923
    %v938 = vadd.f32 %v833, %v928
    %v939 = vadd.f32 %v834, %v933
    %v940 = vld [vmem:[%s4] sm:$0xff]
    %v941 = vld [vmem:[%s4 + $0x8] sm:$0xff]
    %v942 = vld [vmem:[%s4 + $0x10] sm:$0xff]
    %v943 = vld [vmem:[%s4 + $0x18] sm:$0xff]
    %945 = vset.pattern.permute.xlu0 0
    %946 = vperm.xlu0 %945, %v940
    %v947 = vpop.permute.xlu0 %946
    %950 = vset.pattern.permute.xlu0 0
    %951 = vperm.xlu0 %950, %v941
    %v952 = vpop.permute.xlu0 %951
    %955 = vset.pattern.permute.xlu0 0
    %956 = vperm.xlu0 %955, %v942
    %v957 = vpop.permute.xlu0 %956
    %960 = vset.pattern.permute.xlu0 0
    %961 = vperm.xlu0 %960, %v943
    %v962 = vpop.permute.xlu0 %961
    %v964 = vadd.f32 %v936, %v947
    %v965 = vadd.f32 %v937, %v952
    %v966 = vadd.f32 %v938, %v957
    %v967 = vadd.f32 %v939, %v962
    %v968 = vmax.f32 %v964, 0.0
    %v969 = vmax.f32 %v965, 0.0
    %v970 = vmax.f32 %v966, 0.0
    %v971 = vmax.f32 %v967, 0.0
    %972 = vst [vmem:[#allocation8] sm:$0xff] %v968
    %v973 = vld [vmem:[%s5] sm:$0xf]
    %v974 = vld [vmem:[%s5 + $0x4] sm:$0xf]
    %v975 = vld [vmem:[%s5 + $0x8] sm:$0xf]
    %v976 = vld [vmem:[%s5 + $0xc] sm:$0xf]
    %v977 = vld [vmem:[%s5 + $0x10] sm:$0xf]
    %v978 = vld [vmem:[%s5 + $0x14] sm:$0xf]
    %v979 = vld [vmem:[%s5 + $0x18] sm:$0xf]
    %v980 = vld [vmem:[%s5 + $0x1c] sm:$0xf]
    %v981 = vld [vmem:[%s5 + $0x20] sm:$0xf]
    %v982 = vld [vmem:[%s5 + $0x24] sm:$0xf]
    %v983 = vld [vmem:[%s5 + $0x28] sm:$0xf]
    %v984 = vld [vmem:[%s5 + $0x2c] sm:$0xf]
    %v985 = vld [vmem:[%s5 + $0x30] sm:$0xf]
    %v986 = vld [vmem:[%s5 + $0x34] sm:$0xf]
    %v987 = vld [vmem:[%s5 + $0x38] sm:$0xf]
    %v988 = vld [vmem:[%s5 + $0x3c] sm:$0xf]
    %v989 = vunpack.c.l.bf16 %v973
    %v990 = vunpack.c.l.bf16 %v974
    %v991 = vunpack.c.l.bf16 %v975
    %v992 = vunpack.c.l.bf16 %v976
    %v993 = vunpack.c.l.bf16 %v977
    %v994 = vunpack.c.l.bf16 %v978
    %v995 = vunpack.c.l.bf16 %v979
    %v996 = vunpack.c.l.bf16 %v980
    %v997 = vunpack.c.l.bf16 %v981
    %v998 = vunpack.c.l.bf16 %v982
    %v999 = vunpack.c.l.bf16 %v983
    %v1000 = vunpack.c.l.bf16 %v984
    %v1001 = vunpack.c.l.bf16 %v985
    %v1002 = vunpack.c.l.bf16 %v986
    %v1003 = vunpack.c.l.bf16 %v987
    %v1004 = vunpack.c.l.bf16 %v988
    %1005 = vmatprep.subr.mxu0 0.0
    %1006 = vmatpush1.msra.mxu0 %v989
    %1007 = vmatprep.subr.mxu0 0.0
    %1008 = vmatpush1.msra.mxu0 %v990
    %1009 = vmatprep.subr.mxu0 0.0
    %1010 = vmatpush1.msra.mxu0 %v991
    %1011 = vmatprep.subr.mxu0 0.0
    %1012 = vmatpush1.msra.mxu0 %v992
    %1013 = vmatprep.subr.mxu0 0.0
    %1014 = vmatpush1.msra.mxu0 %v993
    %1015 = vmatprep.subr.mxu0 0.0
    %1016 = vmatpush1.msra.mxu0 %v994
    %1017 = vmatprep.subr.mxu0 0.0
    %1018 = vmatpush1.msra.mxu0 %v995
    %1019 = vmatprep.subr.mxu0 0.0
    %1020 = vmatpush1.msra.mxu0 %v996
    %1021 = vmatprep.subr.mxu0 0.0
    %1022 = vmatpush1.msra.mxu0 %v997
    %1023 = vmatprep.subr.mxu0 0.0
    %1024 = vmatpush1.msra.mxu0 %v998
    %1025 = vmatprep.subr.mxu0 0.0
    %1026 = vmatpush1.msra.mxu0 %v999
    %1027 = vmatprep.subr.mxu0 0.0
    %1028 = vmatpush1.msra.mxu0 %v1000
    %1029 = vmatprep.subr.mxu0 0.0
    %1030 = vmatpush1.msra.mxu0 %v1001
    %1031 = vmatprep.subr.mxu0 0.0
    %1032 = vmatpush1.msra.mxu0 %v1002
    %1033 = vmatprep.subr.mxu0 0.0
    %1034 = vmatpush1.msra.mxu0 %v1003
    %1035 = vmatprep.subr.mxu0 0.0
    %1036 = vmatpush1.msra.mxu0 %v1004
    %1037 = vmatprep.subr.mxu0 0.0
    %1038 = vmatpush1.msra.mxu0 0.0
    %1039 = vmatprep.subr.mxu0 0.0
    %1040 = vmatpush1.msra.mxu0 0.0
    %1041 = vmatprep.subr.mxu0 0.0
    %1042 = vmatpush1.msra.mxu0 0.0
    %1043 = vmatprep.subr.mxu0 0.0
    %1044 = vmatpush1.msra.mxu0 0.0
    %1045 = vmatprep.subr.mxu0 0.0
    %1046 = vmatpush1.msra.mxu0 0.0
    %1047 = vmatprep.subr.mxu0 0.0
    %1048 = vmatpush1.msra.mxu0 0.0
    %1049 = vmatprep.subr.mxu0 0.0
    %1050 = vmatpush1.msra.mxu0 0.0
    %1051 = vmatprep.subr.mxu0 0.0
    %1052 = vmatpush1.msra.mxu0 0.0
    %1053 = vmatprep.subr.mxu0 0.0
    %1054 = vmatpush1.msra.mxu0 0.0
    %1055 = vmatprep.subr.mxu0 0.0
    %1056 = vmatpush1.msra.mxu0 0.0
    %1057 = vmatprep.subr.mxu0 0.0
    %1058 = vmatpush1.msra.mxu0 0.0
    %1059 = vmatprep.subr.mxu0 0.0
    %1060 = vmatpush1.msra.mxu0 0.0
    %1061 = vmatprep.subr.mxu0 0.0
    %1062 = vmatpush1.msra.mxu0 0.0
    %1063 = vmatprep.subr.mxu0 0.0
    %1064 = vmatpush1.msra.mxu0 0.0
    %1065 = vmatprep.subr.mxu0 0.0
    %1066 = vmatpush1.msra.mxu0 0.0
    %1067 = vmatprep.subr.mxu0 0.0
    %1068 = vmatpush1.msra.mxu0 0.0
    %1069 = vmatprep.mubr.f32.mxu0 0.0
    %1070 = vmatmul.mubr.f32.gmra.mrb[0].mxu0 %v969
    %v1071 = vpop.f32.mrb[0].mxu0
    %v1072 = vadd.f32 0.0, %v1071
    %v1073 = vpop.f32.mrb[0].mxu0
    %1074 = vdwg.mxu0
    %v1075 = vmul.f32 %v1072, 0.25
    %1076 = vst [vmem:[#allocation8 + $0x8] sm:$0xff] %v1075
    %v1077 = vld [vmem:[#allocation7] sm:$0xf]
    %v1078 = vld [vmem:[#allocation7 + $0x4] sm:$0xf]
    %v1079 = vld [vmem:[#allocation7 + $0x8] sm:$0xf]
    %v1080 = vld [vmem:[#allocation7 + $0xc] sm:$0xf]
    %v1081 = vld [vmem:[#allocation7 + $0x10] sm:$0xf]
    %v1082 = vld [vmem:[#allocation7 + $0x14] sm:$0xf]
    %v1083 = vld [vmem:[#allocation7 + $0x18] sm:$0xf]
    %v1084 = vld [vmem:[#allocation7 + $0x1c] sm:$0xf]
    %v1085 = vld [vmem:[#allocation7 + $0x20] sm:$0xf]
    %v1086 = vld [vmem:[#allocation7 + $0x24] sm:$0xf]
    %v1087 = vld [vmem:[#allocation7 + $0x28] sm:$0xf]
    %v1088 = vld [vmem:[#allocation7 + $0x2c] sm:$0xf]
    %v1089 = vld [vmem:[#allocation7 + $0x30] sm:$0xf]
    %v1090 = vld [vmem:[#allocation7 + $0x34] sm:$0xf]
    %v1091 = vld [vmem:[#allocation7 + $0x38] sm:$0xf]
    %v1092 = vld [vmem:[#allocation7 + $0x3c] sm:$0xf]
    %v1093 = vunpack.c.l.bf16 %v1077
    %v1094 = vunpack.c.l.bf16 %v1078
    %v1095 = vunpack.c.l.bf16 %v1079
    %v1096 = vunpack.c.l.bf16 %v1080
    %v1097 = vunpack.c.l.bf16 %v1081
    %v1098 = vunpack.c.l.bf16 %v1082
    %v1099 = vunpack.c.l.bf16 %v1083
    %v1100 = vunpack.c.l.bf16 %v1084
    %v1101 = vunpack.c.l.bf16 %v1085
    %v1102 = vunpack.c.l.bf16 %v1086
    %v1103 = vunpack.c.l.bf16 %v1087
    %v1104 = vunpack.c.l.bf16 %v1088
    %v1105 = vunpack.c.l.bf16 %v1089
    %v1106 = vunpack.c.l.bf16 %v1090
    %v1107 = vunpack.c.l.bf16 %v1091
    %v1108 = vunpack.c.l.bf16 %v1092
    %1109 = vmatprep.subr.mxu0 0.0
    %1110 = vmatpush1.msra.mxu0 %v1093
    %1111 = vmatprep.subr.mxu0 0.0
    %1112 = vmatpush1.msra.mxu0 %v1094
    %1113 = vmatprep.subr.mxu0 0.0
    %1114 = vmatpush1.msra.mxu0 %v1095
    %1115 = vmatprep.subr.mxu0 0.0
    %1116 = vmatpush1.msra.mxu0 %v1096
    %1117 = vmatprep.subr.mxu0 0.0
    %1118 = vmatpush1.msra.mxu0 %v1097
    %1119 = vmatprep.subr.mxu0 0.0
    %1120 = vmatpush1.msra.mxu0 %v1098
    %1121 = vmatprep.subr.mxu0 0.0
    %1122 = vmatpush1.msra.mxu0 %v1099
    %1123 = vmatprep.subr.mxu0 0.0
    %1124 = vmatpush1.msra.mxu0 %v1100
    %1125 = vmatprep.subr.mxu0 0.0
    %1126 = vmatpush1.msra.mxu0 %v1101
    %1127 = vmatprep.subr.mxu0 0.0
    %1128 = vmatpush1.msra.mxu0 %v1102
    %1129 = vmatprep.subr.mxu0 0.0
    %1130 = vmatpush1.msra.mxu0 %v1103
    %1131 = vmatprep.subr.mxu0 0.0
    %1132 = vmatpush1.msra.mxu0 %v1104
    %1133 = vmatprep.subr.mxu0 0.0
    %1134 = vmatpush1.msra.mxu0 %v1105
    %1135 = vmatprep.subr.mxu0 0.0
    %1136 = vmatpush1.msra.mxu0 %v1106
    %1137 = vmatprep.subr.mxu0 0.0
    %1138 = vmatpush1.msra.mxu0 %v1107
    %1139 = vmatprep.subr.mxu0 0.0
    %1140 = vmatpush1.msra.mxu0 %v1108
    %1141 = vmatprep.subr.mxu0 0.0
    %1142 = vmatpush1.msra.mxu0 0.0
    %1143 = vmatprep.subr.mxu0 0.0
    %1144 = vmatpush1.msra.mxu0 0.0
    %1145 = vmatprep.subr.mxu0 0.0
    %1146 = vmatpush1.msra.mxu0 0.0
    %1147 = vmatprep.subr.mxu0 0.0
    %1148 = vmatpush1.msra.mxu0 0.0
    %1149 = vmatprep.subr.mxu0 0.0
    %1150 = vmatpush1.msra.mxu0 0.0
    %1151 = vmatprep.subr.mxu0 0.0
    %1152 = vmatpush1.msra.mxu0 0.0
    %1153 = vmatprep.subr.mxu0 0.0
    %1154 = vmatpush1.msra.mxu0 0.0
    %1155 = vmatprep.subr.mxu0 0.0
    %1156 = vmatpush1.msra.mxu0 0.0
    %1157 = vmatprep.subr.mxu0 0.0
    %1158 = vmatpush1.msra.mxu0 0.0
    %1159 = vmatprep.subr.mxu0 0.0
    %1160 = vmatpush1.msra.mxu0 0.0
    %1161 = vmatprep.subr.mxu0 0.0
    %1162 = vmatpush1.msra.mxu0 0.0
    %1163 = vmatprep.subr.mxu0 0.0
    %1164 = vmatpush1.msra.mxu0 0.0
    %1165 = vmatprep.subr.mxu0 0.0
    %1166 = vmatpush1.msra.mxu0 0.0
    %1167 = vmatprep.subr.mxu0 0.0
    %1168 = vmatpush1.msra.mxu0 0.0
    %1169 = vmatprep.subr.mxu0 0.0
    %1170 = vmatpush1.msra.mxu0 0.0
    %1171 = vmatprep.subr.mxu0 0.0
    %1172 = vmatpush1.msra.mxu0 0.0
    %1173 = vmatprep.mubr.f32.mxu0 0.0
    %1174 = vmatmul.mubr.f32.gmra.mrb[0].mxu0 %v970
    %v1175 = vpop.f32.mrb[0].mxu0
    %v1176 = vadd.f32 0.0, %v1175
    %v1177 = vpop.f32.mrb[0].mxu0
    %1178 = vdwg.mxu0
    %v1179 = vmul.f32 %v1176, 0.25
    %1180 = vst [vmem:[#allocation8 + $0x10] sm:$0xff] %v1179
    %v1181 = vld [vmem:[%s7] sm:$0xf]
    %v1182 = vld [vmem:[%s7 + $0x4] sm:$0xf]
    %v1183 = vld [vmem:[%s7 + $0x8] sm:$0xf]
    %v1184 = vld [vmem:[%s7 + $0xc] sm:$0xf]
    %v1185 = vld [vmem:[%s7 + $0x10] sm:$0xf]
    %v1186 = vld [vmem:[%s7 + $0x14] sm:$0xf]
    %v1187 = vld [vmem:[%s7 + $0x18] sm:$0xf]
    %v1188 = vld [vmem:[%s7 + $0x1c] sm:$0xf]
    %v1189 = vld [vmem:[%s7 + $0x20] sm:$0xf]
    %v1190 = vld [vmem:[%s7 + $0x24] sm:$0xf]
    %v1191 = vld [vmem:[%s7 + $0x28] sm:$0xf]
    %v1192 = vld [vmem:[%s7 + $0x2c] sm:$0xf]
    %v1193 = vld [vmem:[%s7 + $0x30] sm:$0xf]
    %v1194 = vld [vmem:[%s7 + $0x34] sm:$0xf]
    %v1195 = vld [vmem:[%s7 + $0x38] sm:$0xf]
    %v1196 = vld [vmem:[%s7 + $0x3c] sm:$0xf]
    %v1197 = vunpack.c.l.bf16 %v1181
    %v1198 = vunpack.c.l.bf16 %v1182
    %v1199 = vunpack.c.l.bf16 %v1183
    %v1200 = vunpack.c.l.bf16 %v1184
    %v1201 = vunpack.c.l.bf16 %v1185
    %v1202 = vunpack.c.l.bf16 %v1186
    %v1203 = vunpack.c.l.bf16 %v1187
    %v1204 = vunpack.c.l.bf16 %v1188
    %v1205 = vunpack.c.l.bf16 %v1189
    %v1206 = vunpack.c.l.bf16 %v1190
    %v1207 = vunpack.c.l.bf16 %v1191
    %v1208 = vunpack.c.l.bf16 %v1192
    %v1209 = vunpack.c.l.bf16 %v1193
    %v1210 = vunpack.c.l.bf16 %v1194
    %v1211 = vunpack.c.l.bf16 %v1195
    %v1212 = vunpack.c.l.bf16 %v1196
    %1213 = vmatprep.subr.mxu0 0.0
    %1214 = vmatpush1.msra.mxu0 %v1197
    %1215 = vmatprep.subr.mxu0 0.0
    %1216 = vmatpush1.msra.mxu0 %v1198
    %1217 = vmatprep.subr.mxu0 0.0
    %1218 = vmatpush1.msra.mxu0 %v1199
    %1219 = vmatprep.subr.mxu0 0.0
    %1220 = vmatpush1.msra.mxu0 %v1200
    %1221 = vmatprep.subr.mxu0 0.0
    %1222 = vmatpush1.msra.mxu0 %v1201
    %1223 = vmatprep.subr.mxu0 0.0
    %1224 = vmatpush1.msra.mxu0 %v1202
    %1225 = vmatprep.subr.mxu0 0.0
    %1226 = vmatpush1.msra.mxu0 %v1203
    %1227 = vmatprep.subr.mxu0 0.0
    %1228 = vmatpush1.msra.mxu0 %v1204
    %1229 = vmatprep.subr.mxu0 0.0
    %1230 = vmatpush1.msra.mxu0 %v1205
    %1231 = vmatprep.subr.mxu0 0.0
    %1232 = vmatpush1.msra.mxu0 %v1206
    %1233 = vmatprep.subr.mxu0 0.0
    %1234 = vmatpush1.msra.mxu0 %v1207
    %1235 = vmatprep.subr.mxu0 0.0
    %1236 = vmatpush1.msra.mxu0 %v1208
    %1237 = vmatprep.subr.mxu0 0.0
    %1238 = vmatpush1.msra.mxu0 %v1209
    %1239 = vmatprep.subr.mxu0 0.0
    %1240 = vmatpush1.msra.mxu0 %v1210
    %1241 = vmatprep.subr.mxu0 0.0
    %1242 = vmatpush1.msra.mxu0 %v1211
    %1243 = vmatprep.subr.mxu0 0.0
    %1244 = vmatpush1.msra.mxu0 %v1212
    %1245 = vmatprep.subr.mxu0 0.0
    %1246 = vmatpush1.msra.mxu0 0.0
    %1247 = vmatprep.subr.mxu0 0.0
    %1248 = vmatpush1.msra.mxu0 0.0
    %1249 = vmatprep.subr.mxu0 0.0
    %1250 = vmatpush1.msra.mxu0 0.0
    %1251 = vmatprep.subr.mxu0 0.0
    %1252 = vmatpush1.msra.mxu0 0.0
    %1253 = vmatprep.subr.mxu0 0.0
    %1254 = vmatpush1.msra.mxu0 0.0
    %1255 = vmatprep.subr.mxu0 0.0
    %1256 = vmatpush1.msra.mxu0 0.0
    %1257 = vmatprep.subr.mxu0 0.0
    %1258 = vmatpush1.msra.mxu0 0.0
    %1259 = vmatprep.subr.mxu0 0.0
    %1260 = vmatpush1.msra.mxu0 0.0
    %1261 = vmatprep.subr.mxu0 0.0
    %1262 = vmatpush1.msra.mxu0 0.0
    %1263 = vmatprep.subr.mxu0 0.0
    %1264 = vmatpush1.msra.mxu0 0.0
    %1265 = vmatprep.subr.mxu0 0.0
    %1266 = vmatpush1.msra.mxu0 0.0
    %1267 = vmatprep.subr.mxu0 0.0
    %1268 = vmatpush1.msra.mxu0 0.0
    %1269 = vmatprep.subr.mxu0 0.0
    %1270 = vmatpush1.msra.mxu0 0.0
    %1271 = vmatprep.subr.mxu0 0.0
    %1272 = vmatpush1.msra.mxu0 0.0
    %1273 = vmatprep.subr.mxu0 0.0
    %1274 = vmatpush1.msra.mxu0 0.0
    %1275 = vmatprep.subr.mxu0 0.0
    %1276 = vmatpush1.msra.mxu0 0.0
    %1277 = vmatprep.mubr.f32.mxu0 0.0
    %1278 = vmatmul.mubr.f32.gmra.mrb[0].mxu0 %v971
    %v1279 = vpop.f32.mrb[0].mxu0
    %v1280 = vadd.f32 0.0, %v1279
    %v1281 = vpop.f32.mrb[0].mxu0
    %1282 = vdwg.mxu0
    %v1283 = vmul.f32 %v1280, 0.0625
    %1284 = vst [vmem:[#allocation8 + $0x18] sm:$0xff] %v1283
    // Predicated region
    $region46: #{tpu_custom_call.1} parent=1 // pred_check
      _
    $region47: #{tpu_custom_call.1} parent=1 // pred_check_branch
      %1286 = sbr.rel (0) target = $region49
    $region48: #{tpu_custom_call.1} parent=1 // pred_region
      %s1288 = ssub.s32 512, 512
      %1289 = vsyncadd [#allocation4], %s1288
      %s1290 = sshll.u32 [#allocation8], 4
      %s1291 = int_to_ptr.vmem [resolvable:$true] %s1290
      %1296 = dma.vmem_to_hbm [thread:$0]  %s1291, 512, %s8, [#allocation4], 128, 128, 8
    $region49: #{tpu_custom_call.1} parent=1 // pred_fallthru
      _
    // Predicated region
    $region50: #{tpu_custom_call.1} parent=1 // pred_check
      _
    $region51: #{tpu_custom_call.1} parent=1 // pred_check_branch
      %1298 = sbr.rel (0) target = $region53
    $region52: #{tpu_custom_call.1} parent=1 // pred_region
      %1299 = dma.done [#allocation4], 512
    $region53: #{tpu_custom_call.1} parent=1 // pred_fallthru
      _
    %1300 = vsyncpa [#allocation3], 1
    %1301 = vsyncpa [#allocation6], 1
    %1302 = vsyncpa [#allocation4], 1

</llo_original>
